<compile_context>
chip_gen: v7x
topology: tpu7x:2x2x1
jax: 0.10.0
libtpu: 0.0.40
codegen_flags: <defaults>
</compile_context>

<pallas_src>
import jax
import jax.numpy as jnp
import numpy as np
from jax.experimental import pallas as pl
from jax.experimental.pallas import tpu as pltpu


def _vmem():
    # Whole-array block, resident in VMEM (all operands here are tiny).
    return pl.BlockSpec(memory_space=pltpu.MemorySpace.VMEM)


# ---------------------------------------------------------------------------
# Fused forward kernel
# ---------------------------------------------------------------------------
def _classifier_kernel(xi_ref, w1_ref, w2t_ref, w1p_ref, w2p_ref, w3p_ref,
                       b_ref, sel1_ref, o_ref):
    f32 = jnp.float32

    def mm(a, b):
        return jnp.dot(a, b, preferred_element_type=f32)

    n_batch = o_ref.shape[0]
    rows1 = 24 * n_batch

    # Small operands hoisted once; big weights are read at their use sites.
    b_c1 = b_ref[0:1, :]            # conv1 bias, lanes = (oc, ow) padded  (1, 256)
    b_c2 = b_ref[1:2, 0:128]        # conv2 bias, lanes = (oc, ow)         (1, 128)
    b_f1 = b_ref[2:3, 0:128]
    b_f2 = b_ref[3:4, 0:64]
    b_f3 = b_ref[4:5, 0:10]
    sel1 = sel1_ref[...]            # (40, 24) pool1 even-row / conv2-tap selector

    # ---- conv1 + bias + ReLU: one batched matmul (rows = n*24 + oh) --------
    act1 = jnp.maximum(mm(xi_ref[...], w1_ref[...]) + b_c1, 0.0)   # (N*24, 256)

    # ---- pool1 2x2 pair-max via XLU roll + VPU max --------------------------
    # Valid pooled values land on (even row, even lane-within-channel);
    # the column compaction is folded into the conv2 Toeplitz weights.
    m1 = jnp.maximum(act1, pltpu.roll(act1, rows1 - 1, 0))   # roll -1 along rows
    m1 = jnp.maximum(m1, pltpu.roll(m1, 255, 1))             # roll -1 along lanes

    fc_rows = []
    for n in range(n_batch):                 # tiny batch: fully unrolled
        # Row selection for all 5 conv2 taps in one tiny matmul:
        # p1[ki*8 + r, :] = pooled1 row (r + ki), lanes stay (ic, 2*w) padded.
        p1 = mm(sel1, m1[n * 24:(n + 1) * 24, :])            # (40, 256)

        # conv2 + bias + ReLU: 5 row-band taps, K = 256, 8-aligned slices.
        acc2 = mm(p1[0:8, :], w2t_ref[0])
        for ki in range(1, 5):
            acc2 = acc2 + mm(p1[ki * 8:ki * 8 + 8, :], w2t_ref[ki])
        act2 = jnp.maximum(acc2 + b_c2, 0.0)                 # (8, 128)

        # pool2 2x2 pair-max via roll + max (valid at even rows / even lanes);
        # the column compaction is folded into the fc1 weights.
        m2 = jnp.maximum(act2, pltpu.roll(act2, 7, 0))
        m2 = jnp.maximum(m2, pltpu.roll(m2, 127, 1))         # (8, 128)

        # Stage this sample's 4 pooled rows as one lane-dense (1, 512) row.
        fc_rows.append(jnp.concatenate(
            [m2[0:1, :], m2[2:3, :], m2[4:5, :], m2[6:7, :]], axis=1))

    # ---- batched FC tail: 3 matmuls for the whole batch, single store ------
    p2 = jnp.concatenate(fc_rows, axis=0)                    # (N, 512)
    z1 = jnp.maximum(mm(p2, w1p_ref[...]) + b_f1, 0.0)       # (N, 128)
    z2 = jnp.maximum(mm(z1, w2p_ref[...]) + b_f2, 0.0)       # (N, 64)
    o_ref[...] = (mm(z2, w3p_ref[...]) + b_f3).astype(o_ref.dtype)   # (N, 10)


# ---------------------------------------------------------------------------
# One-time parameter preparation (kernel-friendly layouts)
# ---------------------------------------------------------------------------
def _conv_row_toeplitz(w, in_w):
    """(OC, IC, KH, KW) conv weights -> (KH, IC*in_w, OC*out_w) band matrices.

    T[ki, ic*in_w + c, oc*out_w + ow] = w[oc, ic, ki, c - ow] for 0 <= c-ow < KW,
    so that  out[oh, oc*out_w + ow] = sum_ki  X[oh+ki, ic*in_w + c] @ T[ki].
    """
    oc, ic, kh, kw = w.shape
    out_w = in_w - kw + 1
    c = jnp.arange(in_w)
    ow = jnp.arange(out_w)
    kj = c[:, None] - ow[None, :]                      # (in_w, out_w)
    valid = (kj >= 0) & (kj < kw)
    kj_c = jnp.clip(kj, 0, kw - 1)
    wt = jnp.transpose(w, (2, 1, 0, 3))                # (KH, IC, OC, KW)
    band = wt[:, :, :, kj_c]                           # (KH, IC, OC, in_w, out_w)
    band = jnp.where(valid[None, None, None, :, :], band, 0.0)
    band = jnp.transpose(band, (0, 1, 3, 2, 4))        # (KH, IC, in_w, OC, out_w)
    return band.reshape(kh, ic * in_w, oc * out_w)


def prepare_params(params):
    f32 = jnp.float32

    # conv1: combined im2col Toeplitz (420, 256); output lanes = oc*32 + ow,
    # padded to 8 channels x 32 width so in-kernel rolls are 128-aligned.
    w1t = _conv_row_toeplitz(params["conv1_w"], 28)          # (5, 84, 144)
    lane1 = (np.arange(6)[:, None] * 32 + np.arange(24)[None, :]).reshape(-1)
    w1 = jnp.zeros((5 * 84, 256), f32).at[:, lane1].set(w1t.reshape(5 * 84, 144))

    # conv2: per-tap Toeplitz with the pool1 column selection folded in
    # (rows indexed by the padded (ic*32 + 2*w) lane layout) -> (5, 256, 128).
    w2t = _conv_row_toeplitz(params["conv2_w"], 12)          # (5, 72, 128)
    lane2 = (np.arange(6)[:, None] * 32 + 2 * np.arange(12)[None, :]).reshape(-1)
    w2tf = jnp.zeros((5, 256, 128), f32).at[:, lane2, :].set(w2t)

    # fc1: PyTorch flatten order is (c, h, w); fold the pool2 column selection
    # (lane = c*8 + 2*w) and pack the 4 h-taps into one (512, 128) matrix.
    fc1 = params["fc1_w"].reshape(128, 16, 4, 4)             # (out, c, h, w)
    w1p = jnp.transpose(fc1, (2, 1, 3, 0)).reshape(4, 64, 128)   # (h, c*4+w, out)
    lane3 = (np.arange(16)[:, None] * 8 + 2 * np.arange(4)[None, :]).reshape(-1)
    w1pf = jnp.zeros((4, 128, 128), f32).at[:, lane3, :].set(w1p).reshape(512, 128)

    def pad_to(v, n):
        return jnp.pad(v, (0, n - v.shape[0]))

    b_c1 = jnp.zeros((256,), f32).at[lane1].set(jnp.repeat(params["conv1_b"], 24))
    bias = jnp.stack([
        b_c1,                                          # conv1: (oc, ow) padded
        pad_to(jnp.repeat(params["conv2_b"], 8), 256), # conv2: (oc, ow) = 128
        pad_to(params["fc1_b"], 256),
        pad_to(params["fc2_b"], 256),
        pad_to(params["fc3_b"], 256),
    ])

    # pool1 row selector + conv2 tap gather in one matrix:
    # sel1[ki*8 + r, 2*(r + ki)] = 1  (picks pooled row r+ki for tap ki).
    sel1 = np.zeros((40, 24), np.float32)
    for ki in range(5):
        sel1[ki * 8 + np.arange(8), 2 * (np.arange(8) + ki)] = 1.0

    return {
        "w1": w1,                       # (420, 256)
        "w2t": w2tf,                    # (5, 256, 128)
        "w1p": w1pf,                    # (512, 128)
        "w2p": params["fc2_w"].T,       # (128, 64)
        "w3p": params["fc3_w"].T,       # (64, 10)
        "bias": bias,                   # (5, 256)
        "sel1": jnp.asarray(sel1),      # (40, 24)
    }


# ---------------------------------------------------------------------------
# Forward pass: one fused pallas_call
# ---------------------------------------------------------------------------
def classifier_forward(prep, x):
    n = x.shape[0]
    assert x.shape[1:] == (3, 28, 28), x.shape
    # Cheap wrapper-side layout: NCHW -> rows = image row, lanes = (ic, w),
    # then im2col over the 5 conv1 row taps -> (N*24, 420).
    x2 = x.transpose(0, 2, 1, 3).reshape(n, 28, 3 * 28)
    xi = jnp.concatenate([x2[:, k:k + 24, :] for k in range(5)], axis=2)
    xi = xi.reshape(n * 24, 5 * 84)
    return pl.pallas_call(
        _classifier_kernel,
        out_shape=jax.ShapeDtypeStruct((n, 10), jnp.float32),
        in_specs=[_vmem()] * 8,
        out_specs=_vmem(),
    )(xi, prep["w1"], prep["w2t"], prep["w1p"], prep["w2p"], prep["w3p"],
      prep["bias"], prep["sel1"])


# ---------------------------------------------------------------------------
# Parameters (deterministic, PyTorch-default-like uniform init)
# ---------------------------------------------------------------------------
def init_params(key):
    def uniform(k, shape, fan_in):
        bound = 1.0 / jnp.sqrt(jnp.float32(fan_in))
        return jax.random.uniform(k, shape, jnp.float32, -bound, bound)

    ks = jax.random.split(key, 10)
    return {
        "conv1_w": uniform(ks[0], (6, 3, 5, 5), 3 * 5 * 5),
        "conv1_b": uniform(ks[1], (6,), 3 * 5 * 5),
        "conv2_w": uniform(ks[2], (16, 6, 5, 5), 6 * 5 * 5),
        "conv2_b": uniform(ks[3], (16,), 6 * 5 * 5),
        "fc1_w": uniform(ks[4], (128, 16 * 4 * 4), 16 * 4 * 4),
        "fc1_b": uniform(ks[5], (128,), 16 * 4 * 4),
        "fc2_w": uniform(ks[6], (64, 128), 128),
        "fc2_b": uniform(ks[7], (64,), 128),
        "fc3_w": uniform(ks[8], (10, 64), 64),
        "fc3_b": uniform(ks[9], (10,), 64),
    }


# ---------------------------------------------------------------------------
# Pure-JAX reference for a correctness spot-check
# ---------------------------------------------------------------------------
def reference_forward(params, x):
    def conv(x, w, b):
        y = jax.lax.conv_general_dilated(
            x, w, window_strides=(1, 1), padding="VALID",
            dimension_numbers=("NCHW", "OIHW", "NCHW"))
        return jax.nn.relu(y + b.reshape(1, -1, 1, 1))

    def pool(x):
        n, c, h, w = x.shape
        return x.reshape(n, c, h // 2, 2, w // 2, 2).max(axis=(3, 5))

    x = pool(conv(x, params["conv1_w"], params["conv1_b"]))
    x = pool(conv(x, params["conv2_w"], params["conv2_b"]))
    x = x.reshape(x.shape[0], -1)
    x = jax.nn.relu(x @ params["fc1_w"].T + params["fc1_b"])
    x = jax.nn.relu(x @ params["fc2_w"].T + params["fc2_b"])
    return x @ params["fc3_w"].T + params["fc3_b"]


if __name__ == "__main__":
    key = jax.random.PRNGKey(0)
    pkey, xkey = jax.random.split(key)
    params = init_params(pkey)
    prep = prepare_params(params)          # one-time layout prep (outside forward)

    # Input implied by fc1 = Linear(16*4*4, 128): (N, 3, 28, 28). Small batch=2.
    x = jax.random.normal(xkey, (2, 3, 28, 28), dtype=jnp.float32)

    fwd = jax.jit(classifier_forward)
    out = jax.block_until_ready(fwd(prep, x))

    ref = jax.block_until_ready(reference_forward(params, x))
    assert out.shape == (2, 10), out.shape
    err = float(jnp.max(jnp.abs(out - ref)))
    assert jnp.allclose(out, ref, rtol=2e-3, atol=2e-3), err

    print("KERNEL_OK")
</pallas_src>

<mosaic_0001>
module attributes {stable_mosaic.version = 11 : i64} {
  func.func @_classifier_kernel(%arg0: memref<48x420xf32, #tpu.memory_space<vmem>>, %arg1: memref<420x256xf32, #tpu.memory_space<vmem>>, %arg2: memref<5x256x128xf32, #tpu.memory_space<vmem>>, %arg3: memref<512x128xf32, #tpu.memory_space<vmem>>, %arg4: memref<128x64xf32, #tpu.memory_space<vmem>>, %arg5: memref<64x10xf32, #tpu.memory_space<vmem>>, %arg6: memref<5x256xf32, #tpu.memory_space<vmem>>, %arg7: memref<40x24xf32, #tpu.memory_space<vmem>>, %arg8: memref<2x10xf32, #tpu.memory_space<vmem>>) attributes {dimension_semantics = [], scalar_prefetch = 0 : i64, scratch_operands = 0 : i64, tpu.core_type = #tpu.core_type<tc>} {
    %c0 = arith.constant 0 : index
    %c0_0 = arith.constant 0 : index
    %0 = vector.load %arg6[%c0, %c0_0] : memref<5x256xf32, #tpu.memory_space<vmem>>, vector<1x256xf32>
    %c1 = arith.constant 1 : index
    %c0_1 = arith.constant 0 : index
    %1 = vector.load %arg6[%c1, %c0_1] : memref<5x256xf32, #tpu.memory_space<vmem>>, vector<1x128xf32>
    %c2 = arith.constant 2 : index
    %c0_2 = arith.constant 0 : index
    %2 = vector.load %arg6[%c2, %c0_2] : memref<5x256xf32, #tpu.memory_space<vmem>>, vector<1x128xf32>
    %c3 = arith.constant 3 : index
    %c0_3 = arith.constant 0 : index
    %3 = vector.load %arg6[%c3, %c0_3] : memref<5x256xf32, #tpu.memory_space<vmem>>, vector<1x64xf32>
    %c4 = arith.constant 4 : index
    %c0_4 = arith.constant 0 : index
    %4 = vector.load %arg6[%c4, %c0_4] : memref<5x256xf32, #tpu.memory_space<vmem>>, vector<1x10xf32>
    %c0_5 = arith.constant 0 : index
    %c0_6 = arith.constant 0 : index
    %5 = vector.load %arg7[%c0_5, %c0_6] : memref<40x24xf32, #tpu.memory_space<vmem>>, vector<40x24xf32>
    %c0_7 = arith.constant 0 : index
    %c0_8 = arith.constant 0 : index
    %6 = vector.load %arg0[%c0_7, %c0_8] : memref<48x420xf32, #tpu.memory_space<vmem>>, vector<48x420xf32>
    %c0_9 = arith.constant 0 : index
    %c0_10 = arith.constant 0 : index
    %7 = vector.load %arg1[%c0_9, %c0_10] : memref<420x256xf32, #tpu.memory_space<vmem>>, vector<420x256xf32>
    %cst = arith.constant dense<0.000000e+00> : vector<48x256xf32>
    %8 = tpu.matmul %6, %7, %cst {dimension_numbers = #tpu.dot_dimension_numbers<[1], [0], [0], [1], [0, 0, 1, 1], [], []>} : vector<48x420xf32>, vector<420x256xf32>, vector<48x256xf32> -> vector<48x256xf32>
    %9 = vector.broadcast %0 : vector<1x256xf32> to vector<48x256xf32>
    %10 = arith.addf %8, %9 : vector<48x256xf32>
    %cst_11 = arith.constant 0.000000e+00 : f32
    %11 = vector.broadcast %cst_11 : f32 to vector<48x256xf32>
    %12 = arith.maximumf %10, %11 : vector<48x256xf32>
    %c47_i32 = arith.constant 47 : i32
    %13 = tpu.dynamic_rotate %12 by %c47_i32 dim 0 : vector<48x256xf32>, i32 -> vector<48x256xf32>
    %14 = arith.maximumf %12, %13 : vector<48x256xf32>
    %c255_i32 = arith.constant 255 : i32
    %15 = tpu.dynamic_rotate %14 by %c255_i32 dim 1 : vector<48x256xf32>, i32 -> vector<48x256xf32>
    %16 = arith.maximumf %14, %15 : vector<48x256xf32>
    %17 = vector.extract_strided_slice %16 {offsets = [0, 0], sizes = [24, 256], strides = [1, 1]} : vector<48x256xf32> to vector<24x256xf32>
    %cst_12 = arith.constant dense<0.000000e+00> : vector<40x256xf32>
    %18 = tpu.matmul %5, %17, %cst_12 {dimension_numbers = #tpu.dot_dimension_numbers<[1], [0], [0], [1], [0, 0, 1, 1], [], []>} : vector<40x24xf32>, vector<24x256xf32>, vector<40x256xf32> -> vector<40x256xf32>
    %19 = vector.extract_strided_slice %18 {offsets = [0, 0], sizes = [8, 256], strides = [1, 1]} : vector<40x256xf32> to vector<8x256xf32>
    %c0_13 = arith.constant 0 : index
    %c0_14 = arith.constant 0 : index
    %c0_15 = arith.constant 0 : index
    %20 = vector.load %arg2[%c0_13, %c0_14, %c0_15] : memref<5x256x128xf32, #tpu.memory_space<vmem>>, vector<1x256x128xf32>
    %21 = vector.shape_cast %20 : vector<1x256x128xf32> to vector<256x128xf32>
    %cst_16 = arith.constant dense<0.000000e+00> : vector<8x128xf32>
    %22 = tpu.matmul %19, %21, %cst_16 {dimension_numbers = #tpu.dot_dimension_numbers<[1], [0], [0], [1], [0, 0, 1, 1], [], []>} : vector<8x256xf32>, vector<256x128xf32>, vector<8x128xf32> -> vector<8x128xf32>
    %23 = vector.extract_strided_slice %18 {offsets = [8, 0], sizes = [8, 256], strides = [1, 1]} : vector<40x256xf32> to vector<8x256xf32>
    %c1_17 = arith.constant 1 : index
    %c0_18 = arith.constant 0 : index
    %c0_19 = arith.constant 0 : index
    %24 = vector.load %arg2[%c1_17, %c0_18, %c0_19] : memref<5x256x128xf32, #tpu.memory_space<vmem>>, vector<1x256x128xf32>
    %25 = vector.shape_cast %24 : vector<1x256x128xf32> to vector<256x128xf32>
    %cst_20 = arith.constant dense<0.000000e+00> : vector<8x128xf32>
    %26 = tpu.matmul %23, %25, %cst_20 {dimension_numbers = #tpu.dot_dimension_numbers<[1], [0], [0], [1], [0, 0, 1, 1], [], []>} : vector<8x256xf32>, vector<256x128xf32>, vector<8x128xf32> -> vector<8x128xf32>
    %27 = arith.addf %22, %26 : vector<8x128xf32>
    %28 = vector.extract_strided_slice %18 {offsets = [16, 0], sizes = [8, 256], strides = [1, 1]} : vector<40x256xf32> to vector<8x256xf32>
    %c2_21 = arith.constant 2 : index
    %c0_22 = arith.constant 0 : index
    %c0_23 = arith.constant 0 : index
    %29 = vector.load %arg2[%c2_21, %c0_22, %c0_23] : memref<5x256x128xf32, #tpu.memory_space<vmem>>, vector<1x256x128xf32>
    %30 = vector.shape_cast %29 : vector<1x256x128xf32> to vector<256x128xf32>
    %cst_24 = arith.constant dense<0.000000e+00> : vector<8x128xf32>
    %31 = tpu.matmul %28, %30, %cst_24 {dimension_numbers = #tpu.dot_dimension_numbers<[1], [0], [0], [1], [0, 0, 1, 1], [], []>} : vector<8x256xf32>, vector<256x128xf32>, vector<8x128xf32> -> vector<8x128xf32>
    %32 = arith.addf %27, %31 : vector<8x128xf32>
    %33 = vector.extract_strided_slice %18 {offsets = [24, 0], sizes = [8, 256], strides = [1, 1]} : vector<40x256xf32> to vector<8x256xf32>
    %c3_25 = arith.constant 3 : index
    %c0_26 = arith.constant 0 : index
    %c0_27 = arith.constant 0 : index
    %34 = vector.load %arg2[%c3_25, %c0_26, %c0_27] : memref<5x256x128xf32, #tpu.memory_space<vmem>>, vector<1x256x128xf32>
    %35 = vector.shape_cast %34 : vector<1x256x128xf32> to vector<256x128xf32>
    %cst_28 = arith.constant dense<0.000000e+00> : vector<8x128xf32>
    %36 = tpu.matmul %33, %35, %cst_28 {dimension_numbers = #tpu.dot_dimension_numbers<[1], [0], [0], [1], [0, 0, 1, 1], [], []>} : vector<8x256xf32>, vector<256x128xf32>, vector<8x128xf32> -> vector<8x128xf32>
    %37 = arith.addf %32, %36 : vector<8x128xf32>
    %38 = vector.extract_strided_slice %18 {offsets = [32, 0], sizes = [8, 256], strides = [1, 1]} : vector<40x256xf32> to vector<8x256xf32>
    %c4_29 = arith.constant 4 : index
    %c0_30 = arith.constant 0 : index
    %c0_31 = arith.constant 0 : index
    %39 = vector.load %arg2[%c4_29, %c0_30, %c0_31] : memref<5x256x128xf32, #tpu.memory_space<vmem>>, vector<1x256x128xf32>
    %40 = vector.shape_cast %39 : vector<1x256x128xf32> to vector<256x128xf32>
    %cst_32 = arith.constant dense<0.000000e+00> : vector<8x128xf32>
    %41 = tpu.matmul %38, %40, %cst_32 {dimension_numbers = #tpu.dot_dimension_numbers<[1], [0], [0], [1], [0, 0, 1, 1], [], []>} : vector<8x256xf32>, vector<256x128xf32>, vector<8x128xf32> -> vector<8x128xf32>
    %42 = arith.addf %37, %41 : vector<8x128xf32>
    %43 = vector.broadcast %1 : vector<1x128xf32> to vector<8x128xf32>
    %44 = arith.addf %42, %43 : vector<8x128xf32>
    %cst_33 = arith.constant 0.000000e+00 : f32
    %45 = vector.broadcast %cst_33 : f32 to vector<8x128xf32>
    %46 = arith.maximumf %44, %45 : vector<8x128xf32>
    %c7_i32 = arith.constant 7 : i32
    %47 = tpu.dynamic_rotate %46 by %c7_i32 dim 0 : vector<8x128xf32>, i32 -> vector<8x128xf32>
    %48 = arith.maximumf %46, %47 : vector<8x128xf32>
    %c127_i32 = arith.constant 127 : i32
    %49 = tpu.dynamic_rotate %48 by %c127_i32 dim 1 : vector<8x128xf32>, i32 -> vector<8x128xf32>
    %50 = arith.maximumf %48, %49 : vector<8x128xf32>
    %51 = vector.extract_strided_slice %50 {offsets = [0, 0], sizes = [1, 128], strides = [1, 1]} : vector<8x128xf32> to vector<1x128xf32>
    %52 = vector.extract_strided_slice %50 {offsets = [2, 0], sizes = [1, 128], strides = [1, 1]} : vector<8x128xf32> to vector<1x128xf32>
    %53 = vector.extract_strided_slice %50 {offsets = [4, 0], sizes = [1, 128], strides = [1, 1]} : vector<8x128xf32> to vector<1x128xf32>
    %54 = vector.extract_strided_slice %50 {offsets = [6, 0], sizes = [1, 128], strides = [1, 1]} : vector<8x128xf32> to vector<1x128xf32>
    %55 = tpu.concatenate %51, %52, %53, %54 in 1 : vector<1x128xf32>, vector<1x128xf32>, vector<1x128xf32>, vector<1x128xf32> -> vector<1x512xf32>
    %56 = vector.extract_strided_slice %16 {offsets = [24, 0], sizes = [24, 256], strides = [1, 1]} : vector<48x256xf32> to vector<24x256xf32>
    %cst_34 = arith.constant dense<0.000000e+00> : vector<40x256xf32>
    %57 = tpu.matmul %5, %56, %cst_34 {dimension_numbers = #tpu.dot_dimension_numbers<[1], [0], [0], [1], [0, 0, 1, 1], [], []>} : vector<40x24xf32>, vector<24x256xf32>, vector<40x256xf32> -> vector<40x256xf32>
    %58 = vector.extract_strided_slice %57 {offsets = [0, 0], sizes = [8, 256], strides = [1, 1]} : vector<40x256xf32> to vector<8x256xf32>
    %c0_35 = arith.constant 0 : index
    %c0_36 = arith.constant 0 : index
    %c0_37 = arith.constant 0 : index
    %59 = vector.load %arg2[%c0_35, %c0_36, %c0_37] : memref<5x256x128xf32, #tpu.memory_space<vmem>>, vector<1x256x128xf32>
    %60 = vector.shape_cast %59 : vector<1x256x128xf32> to vector<256x128xf32>
    %cst_38 = arith.constant dense<0.000000e+00> : vector<8x128xf32>
    %61 = tpu.matmul %58, %60, %cst_38 {dimension_numbers = #tpu.dot_dimension_numbers<[1], [0], [0], [1], [0, 0, 1, 1], [], []>} : vector<8x256xf32>, vector<256x128xf32>, vector<8x128xf32> -> vector<8x128xf32>
    %62 = vector.extract_strided_slice %57 {offsets = [8, 0], sizes = [8, 256], strides = [1, 1]} : vector<40x256xf32> to vector<8x256xf32>
    %c1_39 = arith.constant 1 : index
    %c0_40 = arith.constant 0 : index
    %c0_41 = arith.constant 0 : index
    %63 = vector.load %arg2[%c1_39, %c0_40, %c0_41] : memref<5x256x128xf32, #tpu.memory_space<vmem>>, vector<1x256x128xf32>
    %64 = vector.shape_cast %63 : vector<1x256x128xf32> to vector<256x128xf32>
    %cst_42 = arith.constant dense<0.000000e+00> : vector<8x128xf32>
    %65 = tpu.matmul %62, %64, %cst_42 {dimension_numbers = #tpu.dot_dimension_numbers<[1], [0], [0], [1], [0, 0, 1, 1], [], []>} : vector<8x256xf32>, vector<256x128xf32>, vector<8x128xf32> -> vector<8x128xf32>
    %66 = arith.addf %61, %65 : vector<8x128xf32>
    %67 = vector.extract_strided_slice %57 {offsets = [16, 0], sizes = [8, 256], strides = [1, 1]} : vector<40x256xf32> to vector<8x256xf32>
    %c2_43 = arith.constant 2 : index
    %c0_44 = arith.constant 0 : index
    %c0_45 = arith.constant 0 : index
    %68 = vector.load %arg2[%c2_43, %c0_44, %c0_45] : memref<5x256x128xf32, #tpu.memory_space<vmem>>, vector<1x256x128xf32>
    %69 = vector.shape_cast %68 : vector<1x256x128xf32> to vector<256x128xf32>
    %cst_46 = arith.constant dense<0.000000e+00> : vector<8x128xf32>
    %70 = tpu.matmul %67, %69, %cst_46 {dimension_numbers = #tpu.dot_dimension_numbers<[1], [0], [0], [1], [0, 0, 1, 1], [], []>} : vector<8x256xf32>, vector<256x128xf32>, vector<8x128xf32> -> vector<8x128xf32>
    %71 = arith.addf %66, %70 : vector<8x128xf32>
    %72 = vector.extract_strided_slice %57 {offsets = [24, 0], sizes = [8, 256], strides = [1, 1]} : vector<40x256xf32> to vector<8x256xf32>
    %c3_47 = arith.constant 3 : index
    %c0_48 = arith.constant 0 : index
    %c0_49 = arith.constant 0 : index
    %73 = vector.load %arg2[%c3_47, %c0_48, %c0_49] : memref<5x256x128xf32, #tpu.memory_space<vmem>>, vector<1x256x128xf32>
    %74 = vector.shape_cast %73 : vector<1x256x128xf32> to vector<256x128xf32>
    %cst_50 = arith.constant dense<0.000000e+00> : vector<8x128xf32>
    %75 = tpu.matmul %72, %74, %cst_50 {dimension_numbers = #tpu.dot_dimension_numbers<[1], [0], [0], [1], [0, 0, 1, 1], [], []>} : vector<8x256xf32>, vector<256x128xf32>, vector<8x128xf32> -> vector<8x128xf32>
    %76 = arith.addf %71, %75 : vector<8x128xf32>
    %77 = vector.extract_strided_slice %57 {offsets = [32, 0], sizes = [8, 256], strides = [1, 1]} : vector<40x256xf32> to vector<8x256xf32>
    %c4_51 = arith.constant 4 : index
    %c0_52 = arith.constant 0 : index
    %c0_53 = arith.constant 0 : index
    %78 = vector.load %arg2[%c4_51, %c0_52, %c0_53] : memref<5x256x128xf32, #tpu.memory_space<vmem>>, vector<1x256x128xf32>
    %79 = vector.shape_cast %78 : vector<1x256x128xf32> to vector<256x128xf32>
    %cst_54 = arith.constant dense<0.000000e+00> : vector<8x128xf32>
    %80 = tpu.matmul %77, %79, %cst_54 {dimension_numbers = #tpu.dot_dimension_numbers<[1], [0], [0], [1], [0, 0, 1, 1], [], []>} : vector<8x256xf32>, vector<256x128xf32>, vector<8x128xf32> -> vector<8x128xf32>
    %81 = arith.addf %76, %80 : vector<8x128xf32>
    %82 = vector.broadcast %1 : vector<1x128xf32> to vector<8x128xf32>
    %83 = arith.addf %81, %82 : vector<8x128xf32>
    %cst_55 = arith.constant 0.000000e+00 : f32
    %84 = vector.broadcast %cst_55 : f32 to vector<8x128xf32>
    %85 = arith.maximumf %83, %84 : vector<8x128xf32>
    %c7_i32_56 = arith.constant 7 : i32
    %86 = tpu.dynamic_rotate %85 by %c7_i32_56 dim 0 : vector<8x128xf32>, i32 -> vector<8x128xf32>
    %87 = arith.maximumf %85, %86 : vector<8x128xf32>
    %c127_i32_57 = arith.constant 127 : i32
    %88 = tpu.dynamic_rotate %87 by %c127_i32_57 dim 1 : vector<8x128xf32>, i32 -> vector<8x128xf32>
    %89 = arith.maximumf %87, %88 : vector<8x128xf32>
    %90 = vector.extract_strided_slice %89 {offsets = [0, 0], sizes = [1, 128], strides = [1, 1]} : vector<8x128xf32> to vector<1x128xf32>
    %91 = vector.extract_strided_slice %89 {offsets = [2, 0], sizes = [1, 128], strides = [1, 1]} : vector<8x128xf32> to vector<1x128xf32>
    %92 = vector.extract_strided_slice %89 {offsets = [4, 0], sizes = [1, 128], strides = [1, 1]} : vector<8x128xf32> to vector<1x128xf32>
    %93 = vector.extract_strided_slice %89 {offsets = [6, 0], sizes = [1, 128], strides = [1, 1]} : vector<8x128xf32> to vector<1x128xf32>
    %94 = tpu.concatenate %90, %91, %92, %93 in 1 : vector<1x128xf32>, vector<1x128xf32>, vector<1x128xf32>, vector<1x128xf32> -> vector<1x512xf32>
    %95 = tpu.concatenate %55, %94 in 0 : vector<1x512xf32>, vector<1x512xf32> -> vector<2x512xf32>
    %c0_58 = arith.constant 0 : index
    %c0_59 = arith.constant 0 : index
    %96 = vector.load %arg3[%c0_58, %c0_59] : memref<512x128xf32, #tpu.memory_space<vmem>>, vector<512x128xf32>
    %cst_60 = arith.constant dense<0.000000e+00> : vector<2x128xf32>
    %97 = tpu.matmul %95, %96, %cst_60 {dimension_numbers = #tpu.dot_dimension_numbers<[1], [0], [0], [1], [0, 0, 1, 1], [], []>} : vector<2x512xf32>, vector<512x128xf32>, vector<2x128xf32> -> vector<2x128xf32>
    %98 = vector.broadcast %2 : vector<1x128xf32> to vector<2x128xf32>
    %99 = arith.addf %97, %98 : vector<2x128xf32>
    %cst_61 = arith.constant 0.000000e+00 : f32
    %100 = vector.broadcast %cst_61 : f32 to vector<2x128xf32>
    %101 = arith.maximumf %99, %100 : vector<2x128xf32>
    %c0_62 = arith.constant 0 : index
    %c0_63 = arith.constant 0 : index
    %102 = vector.load %arg4[%c0_62, %c0_63] : memref<128x64xf32, #tpu.memory_space<vmem>>, vector<128x64xf32>
    %cst_64 = arith.constant dense<0.000000e+00> : vector<2x64xf32>
    %103 = tpu.matmul %101, %102, %cst_64 {dimension_numbers = #tpu.dot_dimension_numbers<[1], [0], [0], [1], [0, 0, 1, 1], [], []>} : vector<2x128xf32>, vector<128x64xf32>, vector<2x64xf32> -> vector<2x64xf32>
    %104 = vector.broadcast %3 : vector<1x64xf32> to vector<2x64xf32>
    %105 = arith.addf %103, %104 : vector<2x64xf32>
    %cst_65 = arith.constant 0.000000e+00 : f32
    %106 = vector.broadcast %cst_65 : f32 to vector<2x64xf32>
    %107 = arith.maximumf %105, %106 : vector<2x64xf32>
    %c0_66 = arith.constant 0 : index
    %c0_67 = arith.constant 0 : index
    %108 = vector.load %arg5[%c0_66, %c0_67] : memref<64x10xf32, #tpu.memory_space<vmem>>, vector<64x10xf32>
    %cst_68 = arith.constant dense<0.000000e+00> : vector<2x10xf32>
    %109 = tpu.matmul %107, %108, %cst_68 {dimension_numbers = #tpu.dot_dimension_numbers<[1], [0], [0], [1], [0, 0, 1, 1], [], []>} : vector<2x64xf32>, vector<64x10xf32>, vector<2x10xf32> -> vector<2x10xf32>
    %110 = vector.broadcast %4 : vector<1x10xf32> to vector<2x10xf32>
    %111 = arith.addf %109, %110 : vector<2x10xf32>
    %c0_69 = arith.constant 0 : index
    %c0_70 = arith.constant 0 : index
    %112 = vector.load %arg8[%c0_69, %c0_70] : memref<2x10xf32, #tpu.memory_space<vmem>>, vector<2x10xf32>
    tpu.vector_store %arg8[%c0_69, %c0_70], %111 {strides = array<i32>} : memref<2x10xf32, #tpu.memory_space<vmem>>, vector<2x10xf32>,
    return
  }
}

</mosaic_0001>

<llo_original>
// kernel: classifier_forward.1
$region0: #{classifier_forward.1}
  #allocation0 [shape = 'u32[]', space=smem, size = 0x4, offset = 0x4, fixed_abs, tag = 'smem constant byte address 0x4 - core index']
  #allocation1 [shape = 'u32[144,128]{1,0:T(1,128)}', space=vmem, size = 0x12000, scoped, tag = 'internal scratch']
  %s0 = inlined_call_operand.vmem [shape: f32[48,420], index: 0, kind: input, shape index: {}]
  %s1 = inlined_call_operand.vmem [shape: f32[420,256], index: 1, kind: input, shape index: {}]
  %s2 = inlined_call_operand.vmem [shape: f32[5,256,128], index: 2, kind: input, shape index: {}]
  %s3 = inlined_call_operand.hbm [shape: f32[512,128], index: 3, kind: input, shape index: {}]
  %s4 = inlined_call_operand.vmem [shape: f32[128,64], index: 4, kind: input, shape index: {}]
  %s5 = inlined_call_operand.vmem [shape: f32[64,10], index: 5, kind: input, shape index: {}]
  %s6 = inlined_call_operand.vmem [shape: f32[5,256], index: 6, kind: input, shape index: {}]
  %s7 = inlined_call_operand.vmem [shape: f32[40,24], index: 7, kind: input, shape index: {}]
  %s8 = inlined_call_operand.hbm [shape: f32[2,10], index: 8, kind: output, shape index: {}]
  %s9 = sld [smem:[#allocation0]]
  $region46: #{classifier_forward.1} parent=0
    _
  %s11 = ssub.s32 1, %s9
  %s12 = scalar_select 0, %s11, %s9
  $region1: #{classifier_forward.1} parent=0
    #allocation2 [shape = 'u8[262144]{0}', space=vmem, size = 0x40000, scoped, tag = 'input window, operand 3, single buffered']
    #allocation3 [shape = 's32[1]{0}', space=sflag, size = 0x4, scoped, tag = 'scoped memory for classifier_forward.1']
    #allocation4 [shape = 's32[1]{0}', space=sflag, size = 0x4, scoped, tag = 'scoped memory for classifier_forward.1']
    #allocation5 [shape = 'u8[1024]{0}', space=vmem, size = 0x400, scoped, tag = 'output window, operand 0, single buffered']
    %13 = vsyncpa [#allocation3], 0
    %14 = vsyncpa [#allocation4], 0
    // Predicated region
    $region2: #{classifier_forward.1} parent=1 // pred_check
      _
    $region3: #{classifier_forward.1} parent=1 // pred_check_branch
      %16 = sbr.rel (0) target = $region5
    $region4: #{classifier_forward.1} parent=1 // pred_region
      _
    $region5: #{classifier_forward.1} parent=1 // pred_fallthru
      _
    // Predicated region
    $region6: #{classifier_forward.1} parent=1 // pred_check
      _
    $region7: #{classifier_forward.1} parent=1 // pred_check_branch
      %18 = sbr.rel (0) target = $region9
    $region8: #{classifier_forward.1} parent=1 // pred_region
      _
    $region9: #{classifier_forward.1} parent=1 // pred_fallthru
      _
    // Predicated region
    $region10: #{classifier_forward.1} parent=1 // pred_check
      _
    $region11: #{classifier_forward.1} parent=1 // pred_check_branch
      %20 = sbr.rel (0) target = $region13
    $region12: #{classifier_forward.1} parent=1 // pred_region
      _
    $region13: #{classifier_forward.1} parent=1 // pred_fallthru
      _
    // Predicated region
    $region14: #{classifier_forward.1} parent=1 // pred_check
      _
    $region15: #{classifier_forward.1} parent=1 // pred_check_branch
      %22 = sbr.rel (0) target = $region17
    $region16: #{classifier_forward.1} parent=1 // pred_region
      %s24 = ssub.s32 8192, 8192
      %25 = vsyncadd [#allocation3], %s24
      %s26 = sshll.u32 [#allocation2], 4
      %s27 = int_to_ptr.vmem [resolvable:$true] %s26
      %32 = dma.hbm_to_vmem [thread:$0]  %s3, 8192, %s27, [#allocation3], 128, 128, 8
    $region17: #{classifier_forward.1} parent=1 // pred_fallthru
      _
    // Predicated region
    $region18: #{classifier_forward.1} parent=1 // pred_check
      _
    $region19: #{classifier_forward.1} parent=1 // pred_check_branch
      %34 = sbr.rel (0) target = $region21
    $region20: #{classifier_forward.1} parent=1 // pred_region
      _
    $region21: #{classifier_forward.1} parent=1 // pred_fallthru
      _
    // Predicated region
    $region22: #{classifier_forward.1} parent=1 // pred_check
      _
    $region23: #{classifier_forward.1} parent=1 // pred_check_branch
      %36 = sbr.rel (0) target = $region25
    $region24: #{classifier_forward.1} parent=1 // pred_region
      _
    $region25: #{classifier_forward.1} parent=1 // pred_fallthru
      _
    // Predicated region
    $region26: #{classifier_forward.1} parent=1 // pred_check
      _
    $region27: #{classifier_forward.1} parent=1 // pred_check_branch
      %38 = sbr.rel (0) target = $region29
    $region28: #{classifier_forward.1} parent=1 // pred_region
      _
    $region29: #{classifier_forward.1} parent=1 // pred_fallthru
      _
    // Predicated region
    $region30: #{classifier_forward.1} parent=1 // pred_check
      _
    $region31: #{classifier_forward.1} parent=1 // pred_check_branch
      %40 = sbr.rel (0) target = $region33
    $region32: #{classifier_forward.1} parent=1 // pred_region
      _
    $region33: #{classifier_forward.1} parent=1 // pred_fallthru
      _
    // Predicated region
    $region34: #{classifier_forward.1} parent=1 // pred_check
      _
    $region35: #{classifier_forward.1} parent=1 // pred_check_branch
      %42 = sbr.rel (0) target = $region37
    $region36: #{classifier_forward.1} parent=1 // pred_region
      %43 = dma.done [#allocation3], 8192
    $region37: #{classifier_forward.1} parent=1 // pred_fallthru
      _
    %v44 = vld [vmem:[%s6] ss:$8 sm:$0x3]
    %v45 = vld [vmem:[%s6 + $0x1] ss:$0 sm:$0xff]
    %v46 = vld [vmem:[%s6 + $0x2] ss:$0 sm:$0xff]
    %v47 = vld [vmem:[%s6 + $0x3] ss:$0 sm:$0xff]
    %v48 = vld [vmem:[%s6 + $0x4] ss:$0 sm:$0xff]
    %v49 = vld [vmem:[%s7] sm:$0xff]
    %v50 = vld [vmem:[%s7 + $0x8] sm:$0xff]
    %v51 = vld [vmem:[%s7 + $0x10] sm:$0xff]
    %v52 = vld [vmem:[%s7 + $0x18] sm:$0xff]
    %v53 = vld [vmem:[%s7 + $0x20] sm:$0xff]
    %v54 = vld [vmem:[%s0] sm:$0xff]
    %v55 = vld [vmem:[%s0 + $0x8] sm:$0xff]
    %v56 = vld [vmem:[%s0 + $0x10] sm:$0xff]
    %v57 = vld [vmem:[%s0 + $0x18] sm:$0xff]
    %v58 = vld [vmem:[%s0 + $0x20] sm:$0xff]
    %v59 = vld [vmem:[%s0 + $0x28] sm:$0xff]
    %v60 = vld [vmem:[%s0 + $0x30] sm:$0xff]
    %v61 = vld [vmem:[%s0 + $0x38] sm:$0xff]
    %v62 = vld [vmem:[%s0 + $0x40] sm:$0xff]
    %v63 = vld [vmem:[%s0 + $0x48] sm:$0xff]
    %v64 = vld [vmem:[%s0 + $0x50] sm:$0xff]
    %v65 = vld [vmem:[%s0 + $0x58] sm:$0xff]
    %v66 = vld [vmem:[%s0 + $0x60] sm:$0xff]
    %v67 = vld [vmem:[%s0 + $0x68] sm:$0xff]
    %v68 = vld [vmem:[%s0 + $0x70] sm:$0xff]
    %v69 = vld [vmem:[%s0 + $0x78] sm:$0xff]
    %v70 = vld [vmem:[%s0 + $0x80] sm:$0xff]
    %v71 = vld [vmem:[%s0 + $0x88] sm:$0xff]
    %v72 = vld [vmem:[%s0 + $0x90] sm:$0xff]
    %v73 = vld [vmem:[%s0 + $0x98] sm:$0xff]
    %v74 = vld [vmem:[%s0 + $0xa0] sm:$0xff]
    %v75 = vld [vmem:[%s0 + $0xa8] sm:$0xff]
    %v76 = vld [vmem:[%s0 + $0xb0] sm:$0xff]
    %v77 = vld [vmem:[%s0 + $0xb8] sm:$0xff]
    %v78 = vld [vmem:[%s1] sm:$0xff]
    %v79 = vld [vmem:[%s1 + $0x8] sm:$0xff]
    %v80 = vld [vmem:[%s1 + $0x10] sm:$0xff]
    %v81 = vld [vmem:[%s1 + $0x18] sm:$0xff]
    %v82 = vld [vmem:[%s1 + $0x20] sm:$0xff]
    %v83 = vld [vmem:[%s1 + $0x28] sm:$0xff]
    %v84 = vld [vmem:[%s1 + $0x30] sm:$0xff]
    %v85 = vld [vmem:[%s1 + $0x38] sm:$0xff]
    %v86 = vld [vmem:[%s1 + $0x40] sm:$0xff]
    %v87 = vld [vmem:[%s1 + $0x48] sm:$0xff]
    %v88 = vld [vmem:[%s1 + $0x50] sm:$0xff]
    %v89 = vld [vmem:[%s1 + $0x58] sm:$0xff]
    %v90 = vld [vmem:[%s1 + $0x60] sm:$0xff]
    %v91 = vld [vmem:[%s1 + $0x68] sm:$0xff]
    %v92 = vld [vmem:[%s1 + $0x70] sm:$0xff]
    %v93 = vld [vmem:[%s1 + $0x78] sm:$0xff]
    %v94 = vld [vmem:[%s1 + $0x80] sm:$0xff]
    %v95 = vld [vmem:[%s1 + $0x88] sm:$0xff]
    %v96 = vld [vmem:[%s1 + $0x90] sm:$0xff]
    %v97 = vld [vmem:[%s1 + $0x98] sm:$0xff]
    %v98 = vld [vmem:[%s1 + $0xa0] sm:$0xff]
    %v99 = vld [vmem:[%s1 + $0xa8] sm:$0xff]
    %v100 = vld [vmem:[%s1 + $0xb0] sm:$0xff]
    %v101 = vld [vmem:[%s1 + $0xb8] sm:$0xff]
    %v102 = vld [vmem:[%s1 + $0xc0] sm:$0xff]
    %v103 = vld [vmem:[%s1 + $0xc8] sm:$0xff]
    %v104 = vld [vmem:[%s1 + $0xd0] sm:$0xff]
    %v105 = vld [vmem:[%s1 + $0xd8] sm:$0xff]
    %v106 = vld [vmem:[%s1 + $0xe0] sm:$0xff]
    %v107 = vld [vmem:[%s1 + $0xe8] sm:$0xff]
    %v108 = vld [vmem:[%s1 + $0xf0] sm:$0xff]
    %v109 = vld [vmem:[%s1 + $0xf8] sm:$0xff]
    %v110 = vld [vmem:[%s1 + $0x100] sm:$0xff]
    %v111 = vld [vmem:[%s1 + $0x108] sm:$0xff]
    %v112 = vld [vmem:[%s1 + $0x110] sm:$0xff]
    %v113 = vld [vmem:[%s1 + $0x118] sm:$0xff]
    %v114 = vld [vmem:[%s1 + $0x120] sm:$0xff]
    %v115 = vld [vmem:[%s1 + $0x128] sm:$0xff]
    %v116 = vld [vmem:[%s1 + $0x130] sm:$0xff]
    %v117 = vld [vmem:[%s1 + $0x138] sm:$0xff]
    %v118 = vld [vmem:[%s1 + $0x140] sm:$0xff]
    %v119 = vld [vmem:[%s1 + $0x148] sm:$0xff]
    %v120 = vld [vmem:[%s1 + $0x150] sm:$0xff]
    %v121 = vld [vmem:[%s1 + $0x158] sm:$0xff]
    %v122 = vld [vmem:[%s1 + $0x160] sm:$0xff]
    %v123 = vld [vmem:[%s1 + $0x168] sm:$0xff]
    %v124 = vld [vmem:[%s1 + $0x170] sm:$0xff]
    %v125 = vld [vmem:[%s1 + $0x178] sm:$0xff]
    %v126 = vld [vmem:[%s1 + $0x180] sm:$0xff]
    %v127 = vld [vmem:[%s1 + $0x188] sm:$0xff]
    %v128 = vld [vmem:[%s1 + $0x190] sm:$0xff]
    %v129 = vld [vmem:[%s1 + $0x198] sm:$0xff]
    %v130 = vld [vmem:[%s1 + $0x1a0] sm:$0xff]
    %v131 = vld [vmem:[%s1 + $0x1a8] sm:$0xff]
    %v132 = vld [vmem:[%s1 + $0x1b0] sm:$0xff]
    %v133 = vld [vmem:[%s1 + $0x1b8] sm:$0xff]
    %v134 = vld [vmem:[%s1 + $0x1c0] sm:$0xff]
    %v135 = vld [vmem:[%s1 + $0x1c8] sm:$0xff]
    %v136 = vld [vmem:[%s1 + $0x1d0] sm:$0xff]
    %v137 = vld [vmem:[%s1 + $0x1d8] sm:$0xff]
    %v138 = vld [vmem:[%s1 + $0x1e0] sm:$0xff]
    %v139 = vld [vmem:[%s1 + $0x1e8] sm:$0xff]
    %v140 = vld [vmem:[%s1 + $0x1f0] sm:$0xff]
    %v141 = vld [vmem:[%s1 + $0x1f8] sm:$0xff]
    %v142 = vld [vmem:[%s1 + $0x200] sm:$0xff]
    %v143 = vld [vmem:[%s1 + $0x208] sm:$0xff]
    %v144 = vld [vmem:[%s1 + $0x210] sm:$0xff]
    %v145 = vld [vmem:[%s1 + $0x218] sm:$0xff]
    %v146 = vld [vmem:[%s1 + $0x220] sm:$0xff]
    %v147 = vld [vmem:[%s1 + $0x228] sm:$0xff]
    %v148 = vld [vmem:[%s1 + $0x230] sm:$0xff]
    %v149 = vld [vmem:[%s1 + $0x238] sm:$0xff]
    %v150 = vld [vmem:[%s1 + $0x240] sm:$0xff]
    %v151 = vld [vmem:[%s1 + $0x248] sm:$0xff]
    %v152 = vld [vmem:[%s1 + $0x250] sm:$0xff]
    %v153 = vld [vmem:[%s1 + $0x258] sm:$0xff]
    %v154 = vld [vmem:[%s1 + $0x260] sm:$0xff]
    %v155 = vld [vmem:[%s1 + $0x268] sm:$0xff]
    %v156 = vld [vmem:[%s1 + $0x270] sm:$0xff]
    %v157 = vld [vmem:[%s1 + $0x278] sm:$0xff]
    %v158 = vld [vmem:[%s1 + $0x280] sm:$0xff]
    %v159 = vld [vmem:[%s1 + $0x288] sm:$0xff]
    %v160 = vld [vmem:[%s1 + $0x290] sm:$0xff]
    %v161 = vld [vmem:[%s1 + $0x298] sm:$0xff]
    %v162 = vld [vmem:[%s1 + $0x2a0] sm:$0xff]
    %v163 = vld [vmem:[%s1 + $0x2a8] sm:$0xff]
    %v164 = vld [vmem:[%s1 + $0x2b0] sm:$0xff]
    %v165 = vld [vmem:[%s1 + $0x2b8] sm:$0xff]
    %v166 = vld [vmem:[%s1 + $0x2c0] sm:$0xff]
    %v167 = vld [vmem:[%s1 + $0x2c8] sm:$0xff]
    %v168 = vld [vmem:[%s1 + $0x2d0] sm:$0xff]
    %v169 = vld [vmem:[%s1 + $0x2d8] sm:$0xff]
    %v170 = vld [vmem:[%s1 + $0x2e0] sm:$0xff]
    %v171 = vld [vmem:[%s1 + $0x2e8] sm:$0xff]
    %v172 = vld [vmem:[%s1 + $0x2f0] sm:$0xff]
    %v173 = vld [vmem:[%s1 + $0x2f8] sm:$0xff]
    %v174 = vld [vmem:[%s1 + $0x300] sm:$0xff]
    %v175 = vld [vmem:[%s1 + $0x308] sm:$0xff]
    %v176 = vld [vmem:[%s1 + $0x310] sm:$0xff]
    %v177 = vld [vmem:[%s1 + $0x318] sm:$0xff]
    %v178 = vld [vmem:[%s1 + $0x320] sm:$0xff]
    %v179 = vld [vmem:[%s1 + $0x328] sm:$0xff]
    %v180 = vld [vmem:[%s1 + $0x330] sm:$0xff]
    %v181 = vld [vmem:[%s1 + $0x338] sm:$0xff]
    %v182 = vld [vmem:[%s1 + $0x340] sm:$0xf]
    %v183 = vld [vmem:[%s1 + $0x348] sm:$0xf]
    %v185 = vlaneseq
    %v186 = vshrl.u32 %v185, 7
    %v187 = vsub.s32 0, %v186
    %v188 = vrot.slane %v44, %v187
    %v189 = vlaneseq
    %v190 = vshrl.u32 %v189, 7
    %v191 = vsub.s32 1, %v190
    %v192 = vrot.slane %v44, %v191
    %vm195 = vcmask 293888
    %v197 = vsel %vm195, %v57, 0
    %v200 = vsel %vm195, %v61, 0
    %v203 = vsel %vm195, %v65, 0
    %v206 = vsel %vm195, %v69, 0
    %v209 = vsel %vm195, %v73, 0
    %v212 = vsel %vm195, %v77, 0
    %vm214 = vcmask 1043456
    %v216 = vsel %vm214, %v182, 0
    %v219 = vsel %vm214, %v183, 0
    %221 = vmatprep.subr.mxu0 %v79
    %222 = vmatpush1.msra.mxu0 %v78
    %223 = vmatprep.subr.mxu0 %v81
    %224 = vmatpush1.msra.mxu0 %v80
    %225 = vmatprep.subr.mxu0 %v83
    %226 = vmatpush1.msra.mxu0 %v82
    %227 = vmatprep.subr.mxu0 %v85
    %228 = vmatpush1.msra.mxu0 %v84
    %229 = vmatprep.subr.mxu0 %v87
    %230 = vmatpush1.msra.mxu0 %v86
    %231 = vmatprep.subr.mxu0 %v89
    %232 = vmatpush1.msra.mxu0 %v88
    %233 = vmatprep.subr.mxu0 %v91
    %234 = vmatpush1.msra.mxu0 %v90
    %235 = vmatprep.subr.mxu0 %v93
    %236 = vmatpush1.msra.mxu0 %v92
    %237 = vmatprep.subr.mxu0 %v95
    %238 = vmatpush1.msra.mxu0 %v94
    %239 = vmatprep.subr.mxu0 %v97
    %240 = vmatpush1.msra.mxu0 %v96
    %241 = vmatprep.subr.mxu0 %v99
    %242 = vmatpush1.msra.mxu0 %v98
    %243 = vmatprep.subr.mxu0 %v101
    %244 = vmatpush1.msra.mxu0 %v100
    %245 = vmatprep.subr.mxu0 %v103
    %246 = vmatpush1.msra.mxu0 %v102
    %247 = vmatprep.subr.mxu0 %v105
    %248 = vmatpush1.msra.mxu0 %v104
    %249 = vmatprep.subr.mxu0 %v107
    %250 = vmatpush1.msra.mxu0 %v106
    %251 = vmatprep.subr.mxu0 %v109
    %252 = vmatpush1.msra.mxu0 %v108
    %253 = vmatprep.subr.mxu0 %v111
    %254 = vmatpush1.msra.mxu0 %v110
    %255 = vmatprep.subr.mxu0 %v113
    %256 = vmatpush1.msra.mxu0 %v112
    %257 = vmatprep.subr.mxu0 %v115
    %258 = vmatpush1.msra.mxu0 %v114
    %259 = vmatprep.subr.mxu0 %v117
    %260 = vmatpush1.msra.mxu0 %v116
    %261 = vmatprep.subr.mxu0 %v119
    %262 = vmatpush1.msra.mxu0 %v118
    %263 = vmatprep.subr.mxu0 %v121
    %264 = vmatpush1.msra.mxu0 %v120
    %265 = vmatprep.subr.mxu0 %v123
    %266 = vmatpush1.msra.mxu0 %v122
    %267 = vmatprep.subr.mxu0 %v125
    %268 = vmatpush1.msra.mxu0 %v124
    %269 = vmatprep.subr.mxu0 %v127
    %270 = vmatpush1.msra.mxu0 %v126
    %271 = vmatprep.subr.mxu0 %v129
    %272 = vmatpush1.msra.mxu0 %v128
    %273 = vmatprep.subr.mxu0 %v131
    %274 = vmatpush1.msra.mxu0 %v130
    %275 = vmatprep.subr.mxu0 %v133
    %276 = vmatpush1.msra.mxu0 %v132
    %277 = vmatprep.subr.mxu0 %v135
    %278 = vmatpush1.msra.mxu0 %v134
    %279 = vmatprep.subr.mxu0 %v137
    %280 = vmatpush1.msra.mxu0 %v136
    %281 = vmatprep.subr.mxu0 %v139
    %282 = vmatpush1.msra.mxu0 %v138
    %283 = vmatprep.subr.mxu0 %v141
    %284 = vmatpush1.msra.mxu0 %v140
    %285 = vmatprep.mubr.f32.mxu0 %v55
    %286 = vmatmul.mubr.f32.gmra.mrb[0].mxu0 %v54
    %v287 = vpop.f32.mrb[0].mxu0
    %v288 = vadd.f32 %v188, %v287
    %v289 = vpop.f32.mrb[0].mxu0
    %v290 = vadd.f32 %v192, %v289
    %291 = vmatprep.mubr.f32.mxu0 %v59
    %292 = vmatmul.mubr.f32.gmra.mrb[0].mxu0 %v58
    %v293 = vpop.f32.mrb[0].mxu0
    %v294 = vadd.f32 %v188, %v293
    %v295 = vpop.f32.mrb[0].mxu0
    %v296 = vadd.f32 %v192, %v295
    %297 = vmatprep.mubr.f32.mxu0 %v63
    %298 = vmatmul.mubr.f32.gmra.mrb[0].mxu0 %v62
    %v299 = vpop.f32.mrb[0].mxu0
    %v300 = vadd.f32 %v188, %v299
    %v301 = vpop.f32.mrb[0].mxu0
    %v302 = vadd.f32 %v192, %v301
    %303 = vmatprep.mubr.f32.mxu0 %v67
    %304 = vmatmul.mubr.f32.gmra.mrb[0].mxu0 %v66
    %v305 = vpop.f32.mrb[0].mxu0
    %v306 = vadd.f32 %v188, %v305
    %v307 = vpop.f32.mrb[0].mxu0
    %v308 = vadd.f32 %v192, %v307
    %309 = vmatprep.mubr.f32.mxu0 %v71
    %310 = vmatmul.mubr.f32.gmra.mrb[0].mxu0 %v70
    %v311 = vpop.f32.mrb[0].mxu0
    %v312 = vadd.f32 %v188, %v311
    %v313 = vpop.f32.mrb[0].mxu0
    %v314 = vadd.f32 %v192, %v313
    %315 = vmatprep.mubr.f32.mxu0 %v75
    %316 = vmatmul.mubr.f32.gmra.mrb[0].mxu0 %v74
    %v317 = vpop.f32.mrb[0].mxu0
    %v318 = vadd.f32 %v188, %v317
    %v319 = vpop.f32.mrb[0].mxu0
    %v320 = vadd.f32 %v192, %v319
    %321 = vdwg.mxu0
    %322 = vmatprep.subr.mxu0 %v143
    %323 = vmatpush1.msra.mxu0 %v142
    %324 = vmatprep.subr.mxu0 %v145
    %325 = vmatpush1.msra.mxu0 %v144
    %326 = vmatprep.subr.mxu0 %v147
    %327 = vmatpush1.msra.mxu0 %v146
    %328 = vmatprep.subr.mxu0 %v149
    %329 = vmatpush1.msra.mxu0 %v148
    %330 = vmatprep.subr.mxu0 %v151
    %331 = vmatpush1.msra.mxu0 %v150
    %332 = vmatprep.subr.mxu0 %v153
    %333 = vmatpush1.msra.mxu0 %v152
    %334 = vmatprep.subr.mxu0 %v155
    %335 = vmatpush1.msra.mxu0 %v154
    %336 = vmatprep.subr.mxu0 %v157
    %337 = vmatpush1.msra.mxu0 %v156
    %338 = vmatprep.subr.mxu0 %v159
    %339 = vmatpush1.msra.mxu0 %v158
    %340 = vmatprep.subr.mxu0 %v161
    %341 = vmatpush1.msra.mxu0 %v160
    %342 = vmatprep.subr.mxu0 %v163
    %343 = vmatpush1.msra.mxu0 %v162
    %344 = vmatprep.subr.mxu0 %v165
    %345 = vmatpush1.msra.mxu0 %v164
    %346 = vmatprep.subr.mxu0 %v167
    %347 = vmatpush1.msra.mxu0 %v166
    %348 = vmatprep.subr.mxu0 %v169
    %349 = vmatpush1.msra.mxu0 %v168
    %350 = vmatprep.subr.mxu0 %v171
    %351 = vmatpush1.msra.mxu0 %v170
    %352 = vmatprep.subr.mxu0 %v173
    %353 = vmatpush1.msra.mxu0 %v172
    %354 = vmatprep.subr.mxu0 %v175
    %355 = vmatpush1.msra.mxu0 %v174
    %356 = vmatprep.subr.mxu0 %v177
    %357 = vmatpush1.msra.mxu0 %v176
    %358 = vmatprep.subr.mxu0 %v179
    %359 = vmatpush1.msra.mxu0 %v178
    %360 = vmatprep.subr.mxu0 %v181
    %361 = vmatpush1.msra.mxu0 %v180
    %362 = vmatprep.subr.mxu0 %v219
    %363 = vmatpush1.msra.mxu0 %v216
    %364 = vmatprep.subr.mxu0 0.0
    %365 = vmatpush1.msra.mxu0 0.0
    %366 = vmatprep.subr.mxu0 0.0
    %367 = vmatpush1.msra.mxu0 0.0
    %368 = vmatprep.subr.mxu0 0.0
    %369 = vmatpush1.msra.mxu0 0.0
    %370 = vmatprep.subr.mxu0 0.0
    %371 = vmatpush1.msra.mxu0 0.0
    %372 = vmatprep.subr.mxu0 0.0
    %373 = vmatpush1.msra.mxu0 0.0
    %374 = vmatprep.subr.mxu0 0.0
    %375 = vmatpush1.msra.mxu0 0.0
    %376 = vmatprep.subr.mxu0 0.0
    %377 = vmatpush1.msra.mxu0 0.0
    %378 = vmatprep.subr.mxu0 0.0
    %379 = vmatpush1.msra.mxu0 0.0
    %380 = vmatprep.subr.mxu0 0.0
    %381 = vmatpush1.msra.mxu0 0.0
    %382 = vmatprep.subr.mxu0 0.0
    %383 = vmatpush1.msra.mxu0 0.0
    %384 = vmatprep.subr.mxu0 0.0
    %385 = vmatpush1.msra.mxu0 0.0
    %386 = vmatprep.mubr.f32.mxu0 %v197
    %387 = vmatmul.mubr.f32.gmra.mrb[0].mxu0 %v56
    %v388 = vpop.f32.mrb[0].mxu0
    %v389 = vadd.f32 %v288, %v388
    %v390 = vpop.f32.mrb[0].mxu0
    %v391 = vadd.f32 %v290, %v390
    %392 = vmatprep.mubr.f32.mxu0 %v200
    %393 = vmatmul.mubr.f32.gmra.mrb[0].mxu0 %v60
    %v394 = vpop.f32.mrb[0].mxu0
    %v395 = vadd.f32 %v294, %v394
    %v396 = vpop.f32.mrb[0].mxu0
    %v397 = vadd.f32 %v296, %v396
    %398 = vmatprep.mubr.f32.mxu0 %v203
    %399 = vmatmul.mubr.f32.gmra.mrb[0].mxu0 %v64
    %v400 = vpop.f32.mrb[0].mxu0
    %v401 = vadd.f32 %v300, %v400
    %v402 = vpop.f32.mrb[0].mxu0
    %v403 = vadd.f32 %v302, %v402
    %404 = vmatprep.mubr.f32.mxu0 %v206
    %405 = vmatmul.mubr.f32.gmra.mrb[0].mxu0 %v68
    %v406 = vpop.f32.mrb[0].mxu0
    %v407 = vadd.f32 %v306, %v406
    %v408 = vpop.f32.mrb[0].mxu0
    %v409 = vadd.f32 %v308, %v408
    %410 = vmatprep.mubr.f32.mxu0 %v209
    %411 = vmatmul.mubr.f32.gmra.mrb[0].mxu0 %v72
    %v412 = vpop.f32.mrb[0].mxu0
    %v413 = vadd.f32 %v312, %v412
    %v414 = vpop.f32.mrb[0].mxu0
    %v415 = vadd.f32 %v314, %v414
    %416 = vmatprep.mubr.f32.mxu0 %v212
    %417 = vmatmul.mubr.f32.gmra.mrb[0].mxu0 %v76
    %v418 = vpop.f32.mrb[0].mxu0
    %v419 = vadd.f32 %v318, %v418
    %v420 = vpop.f32.mrb[0].mxu0
    %v421 = vadd.f32 %v320, %v420
    %422 = vdwg.mxu0
    %v423 = vmax.f32 %v389, 0.0
    %v424 = vmax.f32 %v391, 0.0
    %v425 = vmax.f32 %v395, 0.0
    %v426 = vmax.f32 %v397, 0.0
    %v427 = vmax.f32 %v401, 0.0
    %v428 = vmax.f32 %v403, 0.0
    %v429 = vmax.f32 %v407, 0.0
    %v430 = vmax.f32 %v409, 0.0
    %v431 = vmax.f32 %v413, 0.0
    %v432 = vmax.f32 %v415, 0.0
    %v433 = vmax.f32 %v419, 0.0
    %v434 = vmax.f32 %v421, 0.0
    %v435 = vrot.slane %v423, 1
    %v436 = vrot.slane %v424, 1
    %v437 = vrot.slane %v425, 1
    %v438 = vrot.slane %v426, 1
    %v439 = vrot.slane %v427, 1
    %v440 = vrot.slane %v428, 1
    %v441 = vrot.slane %v429, 1
    %v442 = vrot.slane %v430, 1
    %v443 = vrot.slane %v431, 1
    %v444 = vrot.slane %v432, 1
    %v445 = vrot.slane %v433, 1
    %v446 = vrot.slane %v434, 1
    %v447 = vlaneseq
    %v448 = vshrl.u32 %v447, 7
    %vm449 = vcmp.lt.s32.totalorder %v448, 7
    %v450 = vsel %vm449, %v443, %v445
    %v451 = vsel %vm449, %v444, %v446
    %v452 = vsel %vm449, %v441, %v443
    %v453 = vsel %vm449, %v442, %v444
    %v454 = vsel %vm449, %v439, %v441
    %v455 = vsel %vm449, %v440, %v442
    %v456 = vsel %vm449, %v437, %v439
    %v457 = vsel %vm449, %v438, %v440
    %v458 = vsel %vm449, %v435, %v437
    %v459 = vsel %vm449, %v436, %v438
    %v460 = vsel %vm449, %v445, %v435
    %v461 = vsel %vm449, %v446, %v436
    %v462 = vmax.f32 %v423, %v458
    %v463 = vmax.f32 %v424, %v459
    %v464 = vmax.f32 %v425, %v456
    %v465 = vmax.f32 %v426, %v457
    %v466 = vmax.f32 %v427, %v454
    %v467 = vmax.f32 %v428, %v455
    %v468 = vmax.f32 %v429, %v452
    %v469 = vmax.f32 %v430, %v453
    %v470 = vmax.f32 %v431, %v450
    %v471 = vmax.f32 %v432, %v451
    %v472 = vmax.f32 %v433, %v460
    %v473 = vmax.f32 %v434, %v461
    %474 = vrot.lane.b32.xlu0 %v462, 127
    %v475 = vpop.permute.xlu0 %474
    %476 = vrot.lane.b32.xlu0 %v464, 127
    %v477 = vpop.permute.xlu0 %476
    %478 = vrot.lane.b32.xlu0 %v466, 127
    %v479 = vpop.permute.xlu0 %478
    %480 = vrot.lane.b32.xlu0 %v468, 127
    %v481 = vpop.permute.xlu0 %480
    %482 = vrot.lane.b32.xlu0 %v470, 127
    %v483 = vpop.permute.xlu0 %482
    %484 = vrot.lane.b32.xlu0 %v472, 127
    %v485 = vpop.permute.xlu0 %484
    %486 = vrot.lane.b32.xlu0 %v463, 127
    %v487 = vpop.permute.xlu0 %486
    %488 = vrot.lane.b32.xlu0 %v465, 127
    %v489 = vpop.permute.xlu0 %488
    %490 = vrot.lane.b32.xlu0 %v467, 127
    %v491 = vpop.permute.xlu0 %490
    %492 = vrot.lane.b32.xlu0 %v469, 127
    %v493 = vpop.permute.xlu0 %492
    %494 = vrot.lane.b32.xlu0 %v471, 127
    %v495 = vpop.permute.xlu0 %494
    %496 = vrot.lane.b32.xlu0 %v473, 127
    %v497 = vpop.permute.xlu0 %496
    %v498 = vlaneseq
    %v499 = vand.u32 %v498, 127
    %vm500 = vcmp.lt.s32.totalorder %v499, 127
    %v501 = vsel %vm500, %v475, %v487
    %v502 = vsel %vm500, %v477, %v489
    %v503 = vsel %vm500, %v479, %v491
    %v504 = vsel %vm500, %v481, %v493
    %v505 = vsel %vm500, %v483, %v495
    %v506 = vsel %vm500, %v485, %v497
    %v507 = vsel %vm500, %v487, %v475
    %v508 = vsel %vm500, %v489, %v477
    %v509 = vsel %vm500, %v491, %v479
    %v510 = vsel %vm500, %v493, %v481
    %v511 = vsel %vm500, %v495, %v483
    %v512 = vsel %vm500, %v497, %v485
    %v513 = vmax.f32 %v462, %v501
    %v514 = vmax.f32 %v463, %v507
    %v515 = vmax.f32 %v464, %v502
    %v516 = vmax.f32 %v465, %v508
    %v517 = vmax.f32 %v466, %v503
    %v518 = vmax.f32 %v467, %v509
    %v519 = vmax.f32 %v468, %v504
    %v520 = vmax.f32 %v469, %v510
    %v521 = vmax.f32 %v470, %v505
    %v522 = vmax.f32 %v471, %v511
    %v523 = vmax.f32 %v472, %v506
    %v524 = vmax.f32 %v473, %v512
    %vm525 = vcmask 195584
    %v527 = vsel %vm525, %v49, 0
    %v530 = vsel %vm525, %v50, 0
    %v533 = vsel %vm525, %v51, 0
    %v536 = vsel %vm525, %v52, 0
    %v539 = vsel %vm525, %v53, 0
    %541 = vmatprep.subr.mxu0 %v514
    %542 = vmatpush1.msra.mxu0 %v513
    %543 = vmatprep.subr.mxu0 %v516
    %544 = vmatpush1.msra.mxu0 %v515
    %545 = vmatprep.subr.mxu0 %v518
    %546 = vmatpush1.msra.mxu0 %v517
    %547 = vmatprep.subr.mxu0 0.0
    %548 = vmatpush1.msra.mxu0 0.0
    %549 = vmatprep.subr.mxu0 0.0
    %550 = vmatpush1.msra.mxu0 0.0
    %551 = vmatprep.subr.mxu0 0.0
    %552 = vmatpush1.msra.mxu0 0.0
    %553 = vmatprep.subr.mxu0 0.0
    %554 = vmatpush1.msra.mxu0 0.0
    %555 = vmatprep.subr.mxu0 0.0
    %556 = vmatpush1.msra.mxu0 0.0
    %557 = vmatprep.subr.mxu0 0.0
    %558 = vmatpush1.msra.mxu0 0.0
    %559 = vmatprep.subr.mxu0 0.0
    %560 = vmatpush1.msra.mxu0 0.0
    %561 = vmatprep.subr.mxu0 0.0
    %562 = vmatpush1.msra.mxu0 0.0
    %563 = vmatprep.subr.mxu0 0.0
    %564 = vmatpush1.msra.mxu0 0.0
    %565 = vmatprep.subr.mxu0 0.0
    %566 = vmatpush1.msra.mxu0 0.0
    %567 = vmatprep.subr.mxu0 0.0
    %568 = vmatpush1.msra.mxu0 0.0
    %569 = vmatprep.subr.mxu0 0.0
    %570 = vmatpush1.msra.mxu0 0.0
    %571 = vmatprep.subr.mxu0 0.0
    %572 = vmatpush1.msra.mxu0 0.0
    %573 = vmatprep.subr.mxu0 0.0
    %574 = vmatpush1.msra.mxu0 0.0
    %575 = vmatprep.subr.mxu0 0.0
    %576 = vmatpush1.msra.mxu0 0.0
    %577 = vmatprep.subr.mxu0 0.0
    %578 = vmatpush1.msra.mxu0 0.0
    %579 = vmatprep.subr.mxu0 0.0
    %580 = vmatpush1.msra.mxu0 0.0
    %581 = vmatprep.subr.mxu0 0.0
    %582 = vmatpush1.msra.mxu0 0.0
    %583 = vmatprep.subr.mxu0 0.0
    %584 = vmatpush1.msra.mxu0 0.0
    %585 = vmatprep.subr.mxu0 0.0
    %586 = vmatpush1.msra.mxu0 0.0
    %587 = vmatprep.subr.mxu0 0.0
    %588 = vmatpush1.msra.mxu0 0.0
    %589 = vmatprep.subr.mxu0 0.0
    %590 = vmatpush1.msra.mxu0 0.0
    %591 = vmatprep.subr.mxu0 0.0
    %592 = vmatpush1.msra.mxu0 0.0
    %593 = vmatprep.subr.mxu0 0.0
    %594 = vmatpush1.msra.mxu0 0.0
    %595 = vmatprep.subr.mxu0 0.0
    %596 = vmatpush1.msra.mxu0 0.0
    %597 = vmatprep.subr.mxu0 0.0
    %598 = vmatpush1.msra.mxu0 0.0
    %599 = vmatprep.subr.mxu0 0.0
    %600 = vmatpush1.msra.mxu0 0.0
    %601 = vmatprep.subr.mxu0 0.0
    %602 = vmatpush1.msra.mxu0 0.0
    %603 = vmatprep.subr.mxu0 0.0
    %604 = vmatpush1.msra.mxu0 0.0
    %605 = vmatprep.mubr.f32.mxu0 0.0
    %606 = vmatmul.mubr.f32.gmra.mrb[0].mxu0 %v527
    %v607 = vpop.f32.mrb[0].mxu0
    %v608 = vadd.f32 0.0, %v607
    %v609 = vpop.f32.mrb[0].mxu0
    %v610 = vadd.f32 0.0, %v609
    %611 = vmatprep.mubr.f32.mxu0 0.0
    %612 = vmatmul.mubr.f32.gmra.mrb[0].mxu0 %v530
    %v613 = vpop.f32.mrb[0].mxu0
    %v614 = vadd.f32 0.0, %v613
    %v615 = vpop.f32.mrb[0].mxu0
    %v616 = vadd.f32 0.0, %v615
    %617 = vmatprep.mubr.f32.mxu0 0.0
    %618 = vmatmul.mubr.f32.gmra.mrb[0].mxu0 %v533
    %v619 = vpop.f32.mrb[0].mxu0
    %v620 = vadd.f32 0.0, %v619
    %v621 = vpop.f32.mrb[0].mxu0
    %v622 = vadd.f32 0.0, %v621
    %623 = vmatprep.mubr.f32.mxu0 0.0
    %624 = vmatmul.mubr.f32.gmra.mrb[0].mxu0 %v536
    %v625 = vpop.f32.mrb[0].mxu0
    %v626 = vadd.f32 0.0, %v625
    %v627 = vpop.f32.mrb[0].mxu0
    %v628 = vadd.f32 0.0, %v627
    %629 = vmatprep.mubr.f32.mxu0 0.0
    %630 = vmatmul.mubr.f32.gmra.mrb[0].mxu0 %v539
    %v631 = vpop.f32.mrb[0].mxu0
    %v632 = vadd.f32 0.0, %v631
    %v633 = vpop.f32.mrb[0].mxu0
    %v634 = vadd.f32 0.0, %v633
    %635 = vdwg.mxu0
    %v636 = vld [vmem:[%s2] sm:$0xff]
    %v637 = vld [vmem:[%s2 + $0x8] sm:$0xff]
    %v638 = vld [vmem:[%s2 + $0x10] sm:$0xff]
    %v639 = vld [vmem:[%s2 + $0x18] sm:$0xff]
    %v640 = vld [vmem:[%s2 + $0x20] sm:$0xff]
    %v641 = vld [vmem:[%s2 + $0x28] sm:$0xff]
    %v642 = vld [vmem:[%s2 + $0x30] sm:$0xff]
    %v643 = vld [vmem:[%s2 + $0x38] sm:$0xff]
    %v644 = vld [vmem:[%s2 + $0x40] sm:$0xff]
    %v645 = vld [vmem:[%s2 + $0x48] sm:$0xff]
    %v646 = vld [vmem:[%s2 + $0x50] sm:$0xff]
    %v647 = vld [vmem:[%s2 + $0x58] sm:$0xff]
    %v648 = vld [vmem:[%s2 + $0x60] sm:$0xff]
    %v649 = vld [vmem:[%s2 + $0x68] sm:$0xff]
    %v650 = vld [vmem:[%s2 + $0x70] sm:$0xff]
    %v651 = vld [vmem:[%s2 + $0x78] sm:$0xff]
    %v652 = vld [vmem:[%s2 + $0x80] sm:$0xff]
    %v653 = vld [vmem:[%s2 + $0x88] sm:$0xff]
    %v654 = vld [vmem:[%s2 + $0x90] sm:$0xff]
    %v655 = vld [vmem:[%s2 + $0x98] sm:$0xff]
    %v656 = vld [vmem:[%s2 + $0xa0] sm:$0xff]
    %v657 = vld [vmem:[%s2 + $0xa8] sm:$0xff]
    %v658 = vld [vmem:[%s2 + $0xb0] sm:$0xff]
    %v659 = vld [vmem:[%s2 + $0xb8] sm:$0xff]
    %v660 = vld [vmem:[%s2 + $0xc0] sm:$0xff]
    %v661 = vld [vmem:[%s2 + $0xc8] sm:$0xff]
    %v662 = vld [vmem:[%s2 + $0xd0] sm:$0xff]
    %v663 = vld [vmem:[%s2 + $0xd8] sm:$0xff]
    %v664 = vld [vmem:[%s2 + $0xe0] sm:$0xff]
    %v665 = vld [vmem:[%s2 + $0xe8] sm:$0xff]
    %v666 = vld [vmem:[%s2 + $0xf0] sm:$0xff]
    %v667 = vld [vmem:[%s2 + $0xf8] sm:$0xff]
    %s668 = scalar_lea.vmem %s2, 256
    %v669 = vld [vmem:[%s668] sm:$0xff]
    %v670 = vld [vmem:[%s668 + $0x8] sm:$0xff]
    %v671 = vld [vmem:[%s668 + $0x10] sm:$0xff]
    %v672 = vld [vmem:[%s668 + $0x18] sm:$0xff]
    %v673 = vld [vmem:[%s668 + $0x20] sm:$0xff]
    %v674 = vld [vmem:[%s668 + $0x28] sm:$0xff]
    %v675 = vld [vmem:[%s668 + $0x30] sm:$0xff]
    %v676 = vld [vmem:[%s668 + $0x38] sm:$0xff]
    %v677 = vld [vmem:[%s668 + $0x40] sm:$0xff]
    %v678 = vld [vmem:[%s668 + $0x48] sm:$0xff]
    %v679 = vld [vmem:[%s668 + $0x50] sm:$0xff]
    %v680 = vld [vmem:[%s668 + $0x58] sm:$0xff]
    %v681 = vld [vmem:[%s668 + $0x60] sm:$0xff]
    %v682 = vld [vmem:[%s668 + $0x68] sm:$0xff]
    %v683 = vld [vmem:[%s668 + $0x70] sm:$0xff]
    %v684 = vld [vmem:[%s668 + $0x78] sm:$0xff]
    %v685 = vld [vmem:[%s668 + $0x80] sm:$0xff]
    %v686 = vld [vmem:[%s668 + $0x88] sm:$0xff]
    %v687 = vld [vmem:[%s668 + $0x90] sm:$0xff]
    %v688 = vld [vmem:[%s668 + $0x98] sm:$0xff]
    %v689 = vld [vmem:[%s668 + $0xa0] sm:$0xff]
    %v690 = vld [vmem:[%s668 + $0xa8] sm:$0xff]
    %v691 = vld [vmem:[%s668 + $0xb0] sm:$0xff]
    %v692 = vld [vmem:[%s668 + $0xb8] sm:$0xff]
    %v693 = vld [vmem:[%s668 + $0xc0] sm:$0xff]
    %v694 = vld [vmem:[%s668 + $0xc8] sm:$0xff]
    %v695 = vld [vmem:[%s668 + $0xd0] sm:$0xff]
    %v696 = vld [vmem:[%s668 + $0xd8] sm:$0xff]
    %v697 = vld [vmem:[%s668 + $0xe0] sm:$0xff]
    %v698 = vld [vmem:[%s668 + $0xe8] sm:$0xff]
    %v699 = vld [vmem:[%s668 + $0xf0] sm:$0xff]
    %v700 = vld [vmem:[%s668 + $0xf8] sm:$0xff]
    %701 = vmatprep.subr.mxu0 0.0
    %702 = vmatpush1.msra.mxu0 %v669
    %703 = vmatprep.subr.mxu0 0.0
    %704 = vmatpush1.msra.mxu0 %v670
    %705 = vmatprep.subr.mxu0 0.0
    %706 = vmatpush1.msra.mxu0 %v671
    %707 = vmatprep.subr.mxu0 0.0
    %708 = vmatpush1.msra.mxu0 %v672
    %709 = vmatprep.subr.mxu0 0.0
    %710 = vmatpush1.msra.mxu0 %v673
    %711 = vmatprep.subr.mxu0 0.0
    %712 = vmatpush1.msra.mxu0 %v674
    %713 = vmatprep.subr.mxu0 0.0
    %714 = vmatpush1.msra.mxu0 %v675
    %715 = vmatprep.subr.mxu0 0.0
    %716 = vmatpush1.msra.mxu0 %v676
    %717 = vmatprep.subr.mxu0 0.0
    %718 = vmatpush1.msra.mxu0 %v677
    %719 = vmatprep.subr.mxu0 0.0
    %720 = vmatpush1.msra.mxu0 %v678
    %721 = vmatprep.subr.mxu0 0.0
    %722 = vmatpush1.msra.mxu0 %v679
    %723 = vmatprep.subr.mxu0 0.0
    %724 = vmatpush1.msra.mxu0 %v680
    %725 = vmatprep.subr.mxu0 0.0
    %726 = vmatpush1.msra.mxu0 %v681
    %727 = vmatprep.subr.mxu0 0.0
    %728 = vmatpush1.msra.mxu0 %v682
    %729 = vmatprep.subr.mxu0 0.0
    %730 = vmatpush1.msra.mxu0 %v683
    %731 = vmatprep.subr.mxu0 0.0
    %732 = vmatpush1.msra.mxu0 %v684
    %733 = vmatprep.subr.mxu0 0.0
    %734 = vmatpush1.msra.mxu0 %v685
    %735 = vmatprep.subr.mxu0 0.0
    %736 = vmatpush1.msra.mxu0 %v686
    %737 = vmatprep.subr.mxu0 0.0
    %738 = vmatpush1.msra.mxu0 %v687
    %739 = vmatprep.subr.mxu0 0.0
    %740 = vmatpush1.msra.mxu0 %v688
    %741 = vmatprep.subr.mxu0 0.0
    %742 = vmatpush1.msra.mxu0 %v689
    %743 = vmatprep.subr.mxu0 0.0
    %744 = vmatpush1.msra.mxu0 %v690
    %745 = vmatprep.subr.mxu0 0.0
    %746 = vmatpush1.msra.mxu0 %v691
    %747 = vmatprep.subr.mxu0 0.0
    %748 = vmatpush1.msra.mxu0 %v692
    %749 = vmatprep.subr.mxu0 0.0
    %750 = vmatpush1.msra.mxu0 %v693
    %751 = vmatprep.subr.mxu0 0.0
    %752 = vmatpush1.msra.mxu0 %v694
    %753 = vmatprep.subr.mxu0 0.0
    %754 = vmatpush1.msra.mxu0 %v695
    %755 = vmatprep.subr.mxu0 0.0
    %756 = vmatpush1.msra.mxu0 %v696
    %757 = vmatprep.subr.mxu0 0.0
    %758 = vmatpush1.msra.mxu0 %v697
    %759 = vmatprep.subr.mxu0 0.0
    %760 = vmatpush1.msra.mxu0 %v698
    %761 = vmatprep.subr.mxu0 0.0
    %762 = vmatpush1.msra.mxu0 %v699
    %763 = vmatprep.subr.mxu0 0.0
    %764 = vmatpush1.msra.mxu0 %v700
    %765 = vmatprep.mubr.f32.mxu0 %v616
    %766 = vmatmul.mubr.f32.gmra.mrb[0].mxu0 %v614
    %v767 = vpop.f32.mrb[0].mxu0
    %v768 = vadd.f32 0.0, %v767
    %v769 = vpop.f32.mrb[0].mxu0
    %770 = vdwg.mxu0
    %771 = vmatprep.subr.mxu0 0.0
    %772 = vmatpush1.msra.mxu0 %v636
    %773 = vmatprep.subr.mxu0 0.0
    %774 = vmatpush1.msra.mxu0 %v637
    %775 = vmatprep.subr.mxu0 0.0
    %776 = vmatpush1.msra.mxu0 %v638
    %777 = vmatprep.subr.mxu0 0.0
    %778 = vmatpush1.msra.mxu0 %v639
    %779 = vmatprep.subr.mxu0 0.0
    %780 = vmatpush1.msra.mxu0 %v640
    %781 = vmatprep.subr.mxu0 0.0
    %782 = vmatpush1.msra.mxu0 %v641
    %783 = vmatprep.subr.mxu0 0.0
    %784 = vmatpush1.msra.mxu0 %v642
    %785 = vmatprep.subr.mxu0 0.0
    %786 = vmatpush1.msra.mxu0 %v643
    %787 = vmatprep.subr.mxu0 0.0
    %788 = vmatpush1.msra.mxu0 %v644
    %789 = vmatprep.subr.mxu0 0.0
    %790 = vmatpush1.msra.mxu0 %v645
    %791 = vmatprep.subr.mxu0 0.0
    %792 = vmatpush1.msra.mxu0 %v646
    %793 = vmatprep.subr.mxu0 0.0
    %794 = vmatpush1.msra.mxu0 %v647
    %795 = vmatprep.subr.mxu0 0.0
    %796 = vmatpush1.msra.mxu0 %v648
    %797 = vmatprep.subr.mxu0 0.0
    %798 = vmatpush1.msra.mxu0 %v649
    %799 = vmatprep.subr.mxu0 0.0
    %800 = vmatpush1.msra.mxu0 %v650
    %801 = vmatprep.subr.mxu0 0.0
    %802 = vmatpush1.msra.mxu0 %v651
    %803 = vmatprep.subr.mxu0 0.0
    %804 = vmatpush1.msra.mxu0 %v652
    %805 = vmatprep.subr.mxu0 0.0
    %806 = vmatpush1.msra.mxu0 %v653
    %807 = vmatprep.subr.mxu0 0.0
    %808 = vmatpush1.msra.mxu0 %v654
    %809 = vmatprep.subr.mxu0 0.0
    %810 = vmatpush1.msra.mxu0 %v655
    %811 = vmatprep.subr.mxu0 0.0
    %812 = vmatpush1.msra.mxu0 %v656
    %813 = vmatprep.subr.mxu0 0.0
    %814 = vmatpush1.msra.mxu0 %v657
    %815 = vmatprep.subr.mxu0 0.0
    %816 = vmatpush1.msra.mxu0 %v658
    %817 = vmatprep.subr.mxu0 0.0
    %818 = vmatpush1.msra.mxu0 %v659
    %819 = vmatprep.subr.mxu0 0.0
    %820 = vmatpush1.msra.mxu0 %v660
    %821 = vmatprep.subr.mxu0 0.0
    %822 = vmatpush1.msra.mxu0 %v661
    %823 = vmatprep.subr.mxu0 0.0
    %824 = vmatpush1.msra.mxu0 %v662
    %825 = vmatprep.subr.mxu0 0.0
    %826 = vmatpush1.msra.mxu0 %v663
    %827 = vmatprep.subr.mxu0 0.0
    %828 = vmatpush1.msra.mxu0 %v664
    %829 = vmatprep.subr.mxu0 0.0
    %830 = vmatpush1.msra.mxu0 %v665
    %831 = vmatprep.subr.mxu0 0.0
    %832 = vmatpush1.msra.mxu0 %v666
    %833 = vmatprep.subr.mxu0 0.0
    %834 = vmatpush1.msra.mxu0 %v667
    %835 = vmatprep.mubr.f32.mxu0 %v610
    %836 = vmatmul.mubr.f32.gmra.mrb[0].mxu0 %v608
    %v837 = vpop.f32.mrb[0].mxu0
    %v838 = vadd.f32 %v768, %v837
    %v839 = vpop.f32.mrb[0].mxu0
    %840 = vdwg.mxu0
    %s841 = scalar_lea.vmem %s2, 512
    %v842 = vld [vmem:[%s841] sm:$0xff]
    %v843 = vld [vmem:[%s841 + $0x8] sm:$0xff]
    %v844 = vld [vmem:[%s841 + $0x10] sm:$0xff]
    %v845 = vld [vmem:[%s841 + $0x18] sm:$0xff]
    %v846 = vld [vmem:[%s841 + $0x20] sm:$0xff]
    %v847 = vld [vmem:[%s841 + $0x28] sm:$0xff]
    %v848 = vld [vmem:[%s841 + $0x30] sm:$0xff]
    %v849 = vld [vmem:[%s841 + $0x38] sm:$0xff]
    %v850 = vld [vmem:[%s841 + $0x40] sm:$0xff]
    %v851 = vld [vmem:[%s841 + $0x48] sm:$0xff]
    %v852 = vld [vmem:[%s841 + $0x50] sm:$0xff]
    %v853 = vld [vmem:[%s841 + $0x58] sm:$0xff]
    %v854 = vld [vmem:[%s841 + $0x60] sm:$0xff]
    %v855 = vld [vmem:[%s841 + $0x68] sm:$0xff]
    %v856 = vld [vmem:[%s841 + $0x70] sm:$0xff]
    %v857 = vld [vmem:[%s841 + $0x78] sm:$0xff]
    %v858 = vld [vmem:[%s841 + $0x80] sm:$0xff]
    %v859 = vld [vmem:[%s841 + $0x88] sm:$0xff]
    %v860 = vld [vmem:[%s841 + $0x90] sm:$0xff]
    %v861 = vld [vmem:[%s841 + $0x98] sm:$0xff]
    %v862 = vld [vmem:[%s841 + $0xa0] sm:$0xff]
    %v863 = vld [vmem:[%s841 + $0xa8] sm:$0xff]
    %v864 = vld [vmem:[%s841 + $0xb0] sm:$0xff]
    %v865 = vld [vmem:[%s841 + $0xb8] sm:$0xff]
    %v866 = vld [vmem:[%s841 + $0xc0] sm:$0xff]
    %v867 = vld [vmem:[%s841 + $0xc8] sm:$0xff]
    %v868 = vld [vmem:[%s841 + $0xd0] sm:$0xff]
    %v869 = vld [vmem:[%s841 + $0xd8] sm:$0xff]
    %v870 = vld [vmem:[%s841 + $0xe0] sm:$0xff]
    %v871 = vld [vmem:[%s841 + $0xe8] sm:$0xff]
    %v872 = vld [vmem:[%s841 + $0xf0] sm:$0xff]
    %v873 = vld [vmem:[%s841 + $0xf8] sm:$0xff]
    %874 = vmatprep.subr.mxu0 0.0
    %875 = vmatpush1.msra.mxu0 %v842
    %876 = vmatprep.subr.mxu0 0.0
    %877 = vmatpush1.msra.mxu0 %v843
    %878 = vmatprep.subr.mxu0 0.0
    %879 = vmatpush1.msra.mxu0 %v844
    %880 = vmatprep.subr.mxu0 0.0
    %881 = vmatpush1.msra.mxu0 %v845
    %882 = vmatprep.subr.mxu0 0.0
    %883 = vmatpush1.msra.mxu0 %v846
    %884 = vmatprep.subr.mxu0 0.0
    %885 = vmatpush1.msra.mxu0 %v847
    %886 = vmatprep.subr.mxu0 0.0
    %887 = vmatpush1.msra.mxu0 %v848
    %888 = vmatprep.subr.mxu0 0.0
    %889 = vmatpush1.msra.mxu0 %v849
    %890 = vmatprep.subr.mxu0 0.0
    %891 = vmatpush1.msra.mxu0 %v850
    %892 = vmatprep.subr.mxu0 0.0
    %893 = vmatpush1.msra.mxu0 %v851
    %894 = vmatprep.subr.mxu0 0.0
    %895 = vmatpush1.msra.mxu0 %v852
    %896 = vmatprep.subr.mxu0 0.0
    %897 = vmatpush1.msra.mxu0 %v853
    %898 = vmatprep.subr.mxu0 0.0
    %899 = vmatpush1.msra.mxu0 %v854
    %900 = vmatprep.subr.mxu0 0.0
    %901 = vmatpush1.msra.mxu0 %v855
    %902 = vmatprep.subr.mxu0 0.0
    %903 = vmatpush1.msra.mxu0 %v856
    %904 = vmatprep.subr.mxu0 0.0
    %905 = vmatpush1.msra.mxu0 %v857
    %906 = vmatprep.subr.mxu0 0.0
    %907 = vmatpush1.msra.mxu0 %v858
    %908 = vmatprep.subr.mxu0 0.0
    %909 = vmatpush1.msra.mxu0 %v859
    %910 = vmatprep.subr.mxu0 0.0
    %911 = vmatpush1.msra.mxu0 %v860
    %912 = vmatprep.subr.mxu0 0.0
    %913 = vmatpush1.msra.mxu0 %v861
    %914 = vmatprep.subr.mxu0 0.0
    %915 = vmatpush1.msra.mxu0 %v862
    %916 = vmatprep.subr.mxu0 0.0
    %917 = vmatpush1.msra.mxu0 %v863
    %918 = vmatprep.subr.mxu0 0.0
    %919 = vmatpush1.msra.mxu0 %v864
    %920 = vmatprep.subr.mxu0 0.0
    %921 = vmatpush1.msra.mxu0 %v865
    %922 = vmatprep.subr.mxu0 0.0
    %923 = vmatpush1.msra.mxu0 %v866
    %924 = vmatprep.subr.mxu0 0.0
    %925 = vmatpush1.msra.mxu0 %v867
    %926 = vmatprep.subr.mxu0 0.0
    %927 = vmatpush1.msra.mxu0 %v868
    %928 = vmatprep.subr.mxu0 0.0
    %929 = vmatpush1.msra.mxu0 %v869
    %930 = vmatprep.subr.mxu0 0.0
    %931 = vmatpush1.msra.mxu0 %v870
    %932 = vmatprep.subr.mxu0 0.0
    %933 = vmatpush1.msra.mxu0 %v871
    %934 = vmatprep.subr.mxu0 0.0
    %935 = vmatpush1.msra.mxu0 %v872
    %936 = vmatprep.subr.mxu0 0.0
    %937 = vmatpush1.msra.mxu0 %v873
    %938 = vmatprep.mubr.f32.mxu0 %v622
    %939 = vmatmul.mubr.f32.gmra.mrb[0].mxu0 %v620
    %v940 = vpop.f32.mrb[0].mxu0
    %v941 = vadd.f32 0.0, %v940
    %v942 = vpop.f32.mrb[0].mxu0
    %943 = vdwg.mxu0
    %v944 = vadd.f32 %v838, %v941
    %s945 = scalar_lea.vmem %s2, 768
    %v946 = vld [vmem:[%s945] sm:$0xff]
    %v947 = vld [vmem:[%s945 + $0x8] sm:$0xff]
    %v948 = vld [vmem:[%s945 + $0x10] sm:$0xff]
    %v949 = vld [vmem:[%s945 + $0x18] sm:$0xff]
    %v950 = vld [vmem:[%s945 + $0x20] sm:$0xff]
    %v951 = vld [vmem:[%s945 + $0x28] sm:$0xff]
    %v952 = vld [vmem:[%s945 + $0x30] sm:$0xff]
    %v953 = vld [vmem:[%s945 + $0x38] sm:$0xff]
    %v954 = vld [vmem:[%s945 + $0x40] sm:$0xff]
    %v955 = vld [vmem:[%s945 + $0x48] sm:$0xff]
    %v956 = vld [vmem:[%s945 + $0x50] sm:$0xff]
    %v957 = vld [vmem:[%s945 + $0x58] sm:$0xff]
    %v958 = vld [vmem:[%s945 + $0x60] sm:$0xff]
    %v959 = vld [vmem:[%s945 + $0x68] sm:$0xff]
    %v960 = vld [vmem:[%s945 + $0x70] sm:$0xff]
    %v961 = vld [vmem:[%s945 + $0x78] sm:$0xff]
    %v962 = vld [vmem:[%s945 + $0x80] sm:$0xff]
    %v963 = vld [vmem:[%s945 + $0x88] sm:$0xff]
    %v964 = vld [vmem:[%s945 + $0x90] sm:$0xff]
    %v965 = vld [vmem:[%s945 + $0x98] sm:$0xff]
    %v966 = vld [vmem:[%s945 + $0xa0] sm:$0xff]
    %v967 = vld [vmem:[%s945 + $0xa8] sm:$0xff]
    %v968 = vld [vmem:[%s945 + $0xb0] sm:$0xff]
    %v969 = vld [vmem:[%s945 + $0xb8] sm:$0xff]
    %v970 = vld [vmem:[%s945 + $0xc0] sm:$0xff]
    %v971 = vld [vmem:[%s945 + $0xc8] sm:$0xff]
    %v972 = vld [vmem:[%s945 + $0xd0] sm:$0xff]
    %v973 = vld [vmem:[%s945 + $0xd8] sm:$0xff]
    %v974 = vld [vmem:[%s945 + $0xe0] sm:$0xff]
    %v975 = vld [vmem:[%s945 + $0xe8] sm:$0xff]
    %v976 = vld [vmem:[%s945 + $0xf0] sm:$0xff]
    %v977 = vld [vmem:[%s945 + $0xf8] sm:$0xff]
    %978 = vmatprep.subr.mxu0 0.0
    %979 = vmatpush1.msra.mxu0 %v946
    %980 = vmatprep.subr.mxu0 0.0
    %981 = vmatpush1.msra.mxu0 %v947
    %982 = vmatprep.subr.mxu0 0.0
    %983 = vmatpush1.msra.mxu0 %v948
    %984 = vmatprep.subr.mxu0 0.0
    %985 = vmatpush1.msra.mxu0 %v949
    %986 = vmatprep.subr.mxu0 0.0
    %987 = vmatpush1.msra.mxu0 %v950
    %988 = vmatprep.subr.mxu0 0.0
    %989 = vmatpush1.msra.mxu0 %v951
    %990 = vmatprep.subr.mxu0 0.0
    %991 = vmatpush1.msra.mxu0 %v952
    %992 = vmatprep.subr.mxu0 0.0
    %993 = vmatpush1.msra.mxu0 %v953
    %994 = vmatprep.subr.mxu0 0.0
    %995 = vmatpush1.msra.mxu0 %v954
    %996 = vmatprep.subr.mxu0 0.0
    %997 = vmatpush1.msra.mxu0 %v955
    %998 = vmatprep.subr.mxu0 0.0
    %999 = vmatpush1.msra.mxu0 %v956
    %1000 = vmatprep.subr.mxu0 0.0
    %1001 = vmatpush1.msra.mxu0 %v957
    %1002 = vmatprep.subr.mxu0 0.0
    %1003 = vmatpush1.msra.mxu0 %v958
    %1004 = vmatprep.subr.mxu0 0.0
    %1005 = vmatpush1.msra.mxu0 %v959
    %1006 = vmatprep.subr.mxu0 0.0
    %1007 = vmatpush1.msra.mxu0 %v960
    %1008 = vmatprep.subr.mxu0 0.0
    %1009 = vmatpush1.msra.mxu0 %v961
    %1010 = vmatprep.subr.mxu0 0.0
    %1011 = vmatpush1.msra.mxu0 %v962
    %1012 = vmatprep.subr.mxu0 0.0
    %1013 = vmatpush1.msra.mxu0 %v963
    %1014 = vmatprep.subr.mxu0 0.0
    %1015 = vmatpush1.msra.mxu0 %v964
    %1016 = vmatprep.subr.mxu0 0.0
    %1017 = vmatpush1.msra.mxu0 %v965
    %1018 = vmatprep.subr.mxu0 0.0
    %1019 = vmatpush1.msra.mxu0 %v966
    %1020 = vmatprep.subr.mxu0 0.0
    %1021 = vmatpush1.msra.mxu0 %v967
    %1022 = vmatprep.subr.mxu0 0.0
    %1023 = vmatpush1.msra.mxu0 %v968
    %1024 = vmatprep.subr.mxu0 0.0
    %1025 = vmatpush1.msra.mxu0 %v969
    %1026 = vmatprep.subr.mxu0 0.0
    %1027 = vmatpush1.msra.mxu0 %v970
    %1028 = vmatprep.subr.mxu0 0.0
    %1029 = vmatpush1.msra.mxu0 %v971
    %1030 = vmatprep.subr.mxu0 0.0
    %1031 = vmatpush1.msra.mxu0 %v972
    %1032 = vmatprep.subr.mxu0 0.0
    %1033 = vmatpush1.msra.mxu0 %v973
    %1034 = vmatprep.subr.mxu0 0.0
    %1035 = vmatpush1.msra.mxu0 %v974
    %1036 = vmatprep.subr.mxu0 0.0
    %1037 = vmatpush1.msra.mxu0 %v975
    %1038 = vmatprep.subr.mxu0 0.0
    %1039 = vmatpush1.msra.mxu0 %v976
    %1040 = vmatprep.subr.mxu0 0.0
    %1041 = vmatpush1.msra.mxu0 %v977
    %1042 = vmatprep.mubr.f32.mxu0 %v628
    %1043 = vmatmul.mubr.f32.gmra.mrb[0].mxu0 %v626
    %v1044 = vpop.f32.mrb[0].mxu0
    %v1045 = vadd.f32 0.0, %v1044
    %v1046 = vpop.f32.mrb[0].mxu0
    %1047 = vdwg.mxu0
    %v1048 = vadd.f32 %v944, %v1045
    %s1049 = scalar_lea.vmem %s2, 1024
    %v1050 = vld [vmem:[%s1049] sm:$0xff]
    %v1051 = vld [vmem:[%s1049 + $0x8] sm:$0xff]
    %v1052 = vld [vmem:[%s1049 + $0x10] sm:$0xff]
    %v1053 = vld [vmem:[%s1049 + $0x18] sm:$0xff]
    %v1054 = vld [vmem:[%s1049 + $0x20] sm:$0xff]
    %v1055 = vld [vmem:[%s1049 + $0x28] sm:$0xff]
    %v1056 = vld [vmem:[%s1049 + $0x30] sm:$0xff]
    %v1057 = vld [vmem:[%s1049 + $0x38] sm:$0xff]
    %v1058 = vld [vmem:[%s1049 + $0x40] sm:$0xff]
    %v1059 = vld [vmem:[%s1049 + $0x48] sm:$0xff]
    %v1060 = vld [vmem:[%s1049 + $0x50] sm:$0xff]
    %v1061 = vld [vmem:[%s1049 + $0x58] sm:$0xff]
    %v1062 = vld [vmem:[%s1049 + $0x60] sm:$0xff]
    %v1063 = vld [vmem:[%s1049 + $0x68] sm:$0xff]
    %v1064 = vld [vmem:[%s1049 + $0x70] sm:$0xff]
    %v1065 = vld [vmem:[%s1049 + $0x78] sm:$0xff]
    %v1066 = vld [vmem:[%s1049 + $0x80] sm:$0xff]
    %v1067 = vld [vmem:[%s1049 + $0x88] sm:$0xff]
    %v1068 = vld [vmem:[%s1049 + $0x90] sm:$0xff]
    %v1069 = vld [vmem:[%s1049 + $0x98] sm:$0xff]
    %v1070 = vld [vmem:[%s1049 + $0xa0] sm:$0xff]
    %v1071 = vld [vmem:[%s1049 + $0xa8] sm:$0xff]
    %v1072 = vld [vmem:[%s1049 + $0xb0] sm:$0xff]
    %v1073 = vld [vmem:[%s1049 + $0xb8] sm:$0xff]
    %v1074 = vld [vmem:[%s1049 + $0xc0] sm:$0xff]
    %v1075 = vld [vmem:[%s1049 + $0xc8] sm:$0xff]
    %v1076 = vld [vmem:[%s1049 + $0xd0] sm:$0xff]
    %v1077 = vld [vmem:[%s1049 + $0xd8] sm:$0xff]
    %v1078 = vld [vmem:[%s1049 + $0xe0] sm:$0xff]
    %v1079 = vld [vmem:[%s1049 + $0xe8] sm:$0xff]
    %v1080 = vld [vmem:[%s1049 + $0xf0] sm:$0xff]
    %v1081 = vld [vmem:[%s1049 + $0xf8] sm:$0xff]
    %1082 = vmatprep.subr.mxu0 0.0
    %1083 = vmatpush1.msra.mxu0 %v1050
    %1084 = vmatprep.subr.mxu0 0.0
    %1085 = vmatpush1.msra.mxu0 %v1051
    %1086 = vmatprep.subr.mxu0 0.0
    %1087 = vmatpush1.msra.mxu0 %v1052
    %1088 = vmatprep.subr.mxu0 0.0
    %1089 = vmatpush1.msra.mxu0 %v1053
    %1090 = vmatprep.subr.mxu0 0.0
    %1091 = vmatpush1.msra.mxu0 %v1054
    %1092 = vmatprep.subr.mxu0 0.0
    %1093 = vmatpush1.msra.mxu0 %v1055
    %1094 = vmatprep.subr.mxu0 0.0
    %1095 = vmatpush1.msra.mxu0 %v1056
    %1096 = vmatprep.subr.mxu0 0.0
    %1097 = vmatpush1.msra.mxu0 %v1057
    %1098 = vmatprep.subr.mxu0 0.0
    %1099 = vmatpush1.msra.mxu0 %v1058
    %1100 = vmatprep.subr.mxu0 0.0
    %1101 = vmatpush1.msra.mxu0 %v1059
    %1102 = vmatprep.subr.mxu0 0.0
    %1103 = vmatpush1.msra.mxu0 %v1060
    %1104 = vmatprep.subr.mxu0 0.0
    %1105 = vmatpush1.msra.mxu0 %v1061
    %1106 = vmatprep.subr.mxu0 0.0
    %1107 = vmatpush1.msra.mxu0 %v1062
    %1108 = vmatprep.subr.mxu0 0.0
    %1109 = vmatpush1.msra.mxu0 %v1063
    %1110 = vmatprep.subr.mxu0 0.0
    %1111 = vmatpush1.msra.mxu0 %v1064
    %1112 = vmatprep.subr.mxu0 0.0
    %1113 = vmatpush1.msra.mxu0 %v1065
    %1114 = vmatprep.subr.mxu0 0.0
    %1115 = vmatpush1.msra.mxu0 %v1066
    %1116 = vmatprep.subr.mxu0 0.0
    %1117 = vmatpush1.msra.mxu0 %v1067
    %1118 = vmatprep.subr.mxu0 0.0
    %1119 = vmatpush1.msra.mxu0 %v1068
    %1120 = vmatprep.subr.mxu0 0.0
    %1121 = vmatpush1.msra.mxu0 %v1069
    %1122 = vmatprep.subr.mxu0 0.0
    %1123 = vmatpush1.msra.mxu0 %v1070
    %1124 = vmatprep.subr.mxu0 0.0
    %1125 = vmatpush1.msra.mxu0 %v1071
    %1126 = vmatprep.subr.mxu0 0.0
    %1127 = vmatpush1.msra.mxu0 %v1072
    %1128 = vmatprep.subr.mxu0 0.0
    %1129 = vmatpush1.msra.mxu0 %v1073
    %1130 = vmatprep.subr.mxu0 0.0
    %1131 = vmatpush1.msra.mxu0 %v1074
    %1132 = vmatprep.subr.mxu0 0.0
    %1133 = vmatpush1.msra.mxu0 %v1075
    %1134 = vmatprep.subr.mxu0 0.0
    %1135 = vmatpush1.msra.mxu0 %v1076
    %1136 = vmatprep.subr.mxu0 0.0
    %1137 = vmatpush1.msra.mxu0 %v1077
    %1138 = vmatprep.subr.mxu0 0.0
    %1139 = vmatpush1.msra.mxu0 %v1078
    %1140 = vmatprep.subr.mxu0 0.0
    %1141 = vmatpush1.msra.mxu0 %v1079
    %1142 = vmatprep.subr.mxu0 0.0
    %1143 = vmatpush1.msra.mxu0 %v1080
    %1144 = vmatprep.subr.mxu0 0.0
    %1145 = vmatpush1.msra.mxu0 %v1081
    %1146 = vmatprep.mubr.f32.mxu0 %v634
    %1147 = vmatmul.mubr.f32.gmra.mrb[0].mxu0 %v632
    %v1148 = vpop.f32.mrb[0].mxu0
    %v1149 = vadd.f32 0.0, %v1148
    %v1150 = vpop.f32.mrb[0].mxu0
    %1151 = vdwg.mxu0
    %v1152 = vadd.f32 %v1048, %v1149
    %v1153 = vadd.f32 %v1152, %v45
    %v1154 = vmax.f32 %v1153, 0.0
    %v1155 = vrot.slane %v1154, 1
    %v1156 = vmax.f32 %v1154, %v1155
    %1157 = vrot.lane.b32.xlu0 %v1156, 127
    %v1158 = vpop.permute.xlu0 %1157
    %v1159 = vmax.f32 %v1156, %v1158
    %v1161 = vrot.slane %v1159, 2
    %v1163 = vrot.slane %v1159, 4
    %v1165 = vrot.slane %v1159, 6
    %1167 = vmatprep.subr.mxu0 %v520
    %1168 = vmatpush1.msra.mxu0 %v519
    %1169 = vmatprep.subr.mxu0 %v522
    %1170 = vmatpush1.msra.mxu0 %v521
    %1171 = vmatprep.subr.mxu0 %v524
    %1172 = vmatpush1.msra.mxu0 %v523
    %1173 = vmatprep.subr.mxu0 0.0
    %1174 = vmatpush1.msra.mxu0 0.0
    %1175 = vmatprep.subr.mxu0 0.0
    %1176 = vmatpush1.msra.mxu0 0.0
    %1177 = vmatprep.subr.mxu0 0.0
    %1178 = vmatpush1.msra.mxu0 0.0
    %1179 = vmatprep.subr.mxu0 0.0
    %1180 = vmatpush1.msra.mxu0 0.0
    %1181 = vmatprep.subr.mxu0 0.0
    %1182 = vmatpush1.msra.mxu0 0.0
    %1183 = vmatprep.subr.mxu0 0.0
    %1184 = vmatpush1.msra.mxu0 0.0
    %1185 = vmatprep.subr.mxu0 0.0
    %1186 = vmatpush1.msra.mxu0 0.0
    %1187 = vmatprep.subr.mxu0 0.0
    %1188 = vmatpush1.msra.mxu0 0.0
    %1189 = vmatprep.subr.mxu0 0.0
    %1190 = vmatpush1.msra.mxu0 0.0
    %1191 = vmatprep.subr.mxu0 0.0
    %1192 = vmatpush1.msra.mxu0 0.0
    %1193 = vmatprep.subr.mxu0 0.0
    %1194 = vmatpush1.msra.mxu0 0.0
    %1195 = vmatprep.subr.mxu0 0.0
    %1196 = vmatpush1.msra.mxu0 0.0
    %1197 = vmatprep.subr.mxu0 0.0
    %1198 = vmatpush1.msra.mxu0 0.0
    %1199 = vmatprep.subr.mxu0 0.0
    %1200 = vmatpush1.msra.mxu0 0.0
    %1201 = vmatprep.subr.mxu0 0.0
    %1202 = vmatpush1.msra.mxu0 0.0
    %1203 = vmatprep.subr.mxu0 0.0
    %1204 = vmatpush1.msra.mxu0 0.0
    %1205 = vmatprep.subr.mxu0 0.0
    %1206 = vmatpush1.msra.mxu0 0.0
    %1207 = vmatprep.subr.mxu0 0.0
    %1208 = vmatpush1.msra.mxu0 0.0
    %1209 = vmatprep.subr.mxu0 0.0
    %1210 = vmatpush1.msra.mxu0 0.0
    %1211 = vmatprep.subr.mxu0 0.0
    %1212 = vmatpush1.msra.mxu0 0.0
    %1213 = vmatprep.subr.mxu0 0.0
    %1214 = vmatpush1.msra.mxu0 0.0
    %1215 = vmatprep.subr.mxu0 0.0
    %1216 = vmatpush1.msra.mxu0 0.0
    %1217 = vmatprep.subr.mxu0 0.0
    %1218 = vmatpush1.msra.mxu0 0.0
    %1219 = vmatprep.subr.mxu0 0.0
    %1220 = vmatpush1.msra.mxu0 0.0
    %1221 = vmatprep.subr.mxu0 0.0
    %1222 = vmatpush1.msra.mxu0 0.0
    %1223 = vmatprep.subr.mxu0 0.0
    %1224 = vmatpush1.msra.mxu0 0.0
    %1225 = vmatprep.subr.mxu0 0.0
    %1226 = vmatpush1.msra.mxu0 0.0
    %1227 = vmatprep.subr.mxu0 0.0
    %1228 = vmatpush1.msra.mxu0 0.0
    %1229 = vmatprep.subr.mxu0 0.0
    %1230 = vmatpush1.msra.mxu0 0.0
    %1231 = vmatprep.mubr.f32.mxu0 0.0
    %1232 = vmatmul.mubr.f32.gmra.mrb[0].mxu0 %v527
    %v1233 = vpop.f32.mrb[0].mxu0
    %v1234 = vadd.f32 0.0, %v1233
    %v1235 = vpop.f32.mrb[0].mxu0
    %v1236 = vadd.f32 0.0, %v1235
    %1237 = vmatprep.mubr.f32.mxu0 0.0
    %1238 = vmatmul.mubr.f32.gmra.mrb[0].mxu0 %v530
    %v1239 = vpop.f32.mrb[0].mxu0
    %v1240 = vadd.f32 0.0, %v1239
    %v1241 = vpop.f32.mrb[0].mxu0
    %v1242 = vadd.f32 0.0, %v1241
    %1243 = vmatprep.mubr.f32.mxu0 0.0
    %1244 = vmatmul.mubr.f32.gmra.mrb[0].mxu0 %v533
    %v1245 = vpop.f32.mrb[0].mxu0
    %v1246 = vadd.f32 0.0, %v1245
    %v1247 = vpop.f32.mrb[0].mxu0
    %v1248 = vadd.f32 0.0, %v1247
    %1249 = vmatprep.mubr.f32.mxu0 0.0
    %1250 = vmatmul.mubr.f32.gmra.mrb[0].mxu0 %v536
    %v1251 = vpop.f32.mrb[0].mxu0
    %v1252 = vadd.f32 0.0, %v1251
    %v1253 = vpop.f32.mrb[0].mxu0
    %v1254 = vadd.f32 0.0, %v1253
    %1255 = vmatprep.mubr.f32.mxu0 0.0
    %1256 = vmatmul.mubr.f32.gmra.mrb[0].mxu0 %v539
    %v1257 = vpop.f32.mrb[0].mxu0
    %v1258 = vadd.f32 0.0, %v1257
    %v1259 = vpop.f32.mrb[0].mxu0
    %v1260 = vadd.f32 0.0, %v1259
    %1261 = vdwg.mxu0
    %1262 = vmatprep.subr.mxu0 0.0
    %1263 = vmatpush1.msra.mxu0 %v669
    %1264 = vmatprep.subr.mxu0 0.0
    %1265 = vmatpush1.msra.mxu0 %v670
    %1266 = vmatprep.subr.mxu0 0.0
    %1267 = vmatpush1.msra.mxu0 %v671
    %1268 = vmatprep.subr.mxu0 0.0
    %1269 = vmatpush1.msra.mxu0 %v672
    %1270 = vmatprep.subr.mxu0 0.0
    %1271 = vmatpush1.msra.mxu0 %v673
    %1272 = vmatprep.subr.mxu0 0.0
    %1273 = vmatpush1.msra.mxu0 %v674
    %1274 = vmatprep.subr.mxu0 0.0
    %1275 = vmatpush1.msra.mxu0 %v675
    %1276 = vmatprep.subr.mxu0 0.0
    %1277 = vmatpush1.msra.mxu0 %v676
    %1278 = vmatprep.subr.mxu0 0.0
    %1279 = vmatpush1.msra.mxu0 %v677
    %1280 = vmatprep.subr.mxu0 0.0
    %1281 = vmatpush1.msra.mxu0 %v678
    %1282 = vmatprep.subr.mxu0 0.0
    %1283 = vmatpush1.msra.mxu0 %v679
    %1284 = vmatprep.subr.mxu0 0.0
    %1285 = vmatpush1.msra.mxu0 %v680
    %1286 = vmatprep.subr.mxu0 0.0
    %1287 = vmatpush1.msra.mxu0 %v681
    %1288 = vmatprep.subr.mxu0 0.0
    %1289 = vmatpush1.msra.mxu0 %v682
    %1290 = vmatprep.subr.mxu0 0.0
    %1291 = vmatpush1.msra.mxu0 %v683
    %1292 = vmatprep.subr.mxu0 0.0
    %1293 = vmatpush1.msra.mxu0 %v684
    %1294 = vmatprep.subr.mxu0 0.0
    %1295 = vmatpush1.msra.mxu0 %v685
    %1296 = vmatprep.subr.mxu0 0.0
    %1297 = vmatpush1.msra.mxu0 %v686
    %1298 = vmatprep.subr.mxu0 0.0
    %1299 = vmatpush1.msra.mxu0 %v687
    %1300 = vmatprep.subr.mxu0 0.0
    %1301 = vmatpush1.msra.mxu0 %v688
    %1302 = vmatprep.subr.mxu0 0.0
    %1303 = vmatpush1.msra.mxu0 %v689
    %1304 = vmatprep.subr.mxu0 0.0
    %1305 = vmatpush1.msra.mxu0 %v690
    %1306 = vmatprep.subr.mxu0 0.0
    %1307 = vmatpush1.msra.mxu0 %v691
    %1308 = vmatprep.subr.mxu0 0.0
    %1309 = vmatpush1.msra.mxu0 %v692
    %1310 = vmatprep.subr.mxu0 0.0
    %1311 = vmatpush1.msra.mxu0 %v693
    %1312 = vmatprep.subr.mxu0 0.0
    %1313 = vmatpush1.msra.mxu0 %v694
    %1314 = vmatprep.subr.mxu0 0.0
    %1315 = vmatpush1.msra.mxu0 %v695
    %1316 = vmatprep.subr.mxu0 0.0
    %1317 = vmatpush1.msra.mxu0 %v696
    %1318 = vmatprep.subr.mxu0 0.0
    %1319 = vmatpush1.msra.mxu0 %v697
    %1320 = vmatprep.subr.mxu0 0.0
    %1321 = vmatpush1.msra.mxu0 %v698
    %1322 = vmatprep.subr.mxu0 0.0
    %1323 = vmatpush1.msra.mxu0 %v699
    %1324 = vmatprep.subr.mxu0 0.0
    %1325 = vmatpush1.msra.mxu0 %v700
    %1326 = vmatprep.mubr.f32.mxu0 %v1242
    %1327 = vmatmul.mubr.f32.gmra.mrb[0].mxu0 %v1240
    %v1328 = vpop.f32.mrb[0].mxu0
    %v1329 = vadd.f32 0.0, %v1328
    %v1330 = vpop.f32.mrb[0].mxu0
    %1331 = vdwg.mxu0
    %1332 = vmatprep.subr.mxu0 0.0
    %1333 = vmatpush1.msra.mxu0 %v636
    %1334 = vmatprep.subr.mxu0 0.0
    %1335 = vmatpush1.msra.mxu0 %v637
    %1336 = vmatprep.subr.mxu0 0.0
    %1337 = vmatpush1.msra.mxu0 %v638
    %1338 = vmatprep.subr.mxu0 0.0
    %1339 = vmatpush1.msra.mxu0 %v639
    %1340 = vmatprep.subr.mxu0 0.0
    %1341 = vmatpush1.msra.mxu0 %v640
    %1342 = vmatprep.subr.mxu0 0.0
    %1343 = vmatpush1.msra.mxu0 %v641
    %1344 = vmatprep.subr.mxu0 0.0
    %1345 = vmatpush1.msra.mxu0 %v642
    %1346 = vmatprep.subr.mxu0 0.0
    %1347 = vmatpush1.msra.mxu0 %v643
    %1348 = vmatprep.subr.mxu0 0.0
    %1349 = vmatpush1.msra.mxu0 %v644
    %1350 = vmatprep.subr.mxu0 0.0
    %1351 = vmatpush1.msra.mxu0 %v645
    %1352 = vmatprep.subr.mxu0 0.0
    %1353 = vmatpush1.msra.mxu0 %v646
    %1354 = vmatprep.subr.mxu0 0.0
    %1355 = vmatpush1.msra.mxu0 %v647
    %1356 = vmatprep.subr.mxu0 0.0
    %1357 = vmatpush1.msra.mxu0 %v648
    %1358 = vmatprep.subr.mxu0 0.0
    %1359 = vmatpush1.msra.mxu0 %v649
    %1360 = vmatprep.subr.mxu0 0.0
    %1361 = vmatpush1.msra.mxu0 %v650
    %1362 = vmatprep.subr.mxu0 0.0
    %1363 = vmatpush1.msra.mxu0 %v651
    %1364 = vmatprep.subr.mxu0 0.0
    %1365 = vmatpush1.msra.mxu0 %v652
    %1366 = vmatprep.subr.mxu0 0.0
    %1367 = vmatpush1.msra.mxu0 %v653
    %1368 = vmatprep.subr.mxu0 0.0
    %1369 = vmatpush1.msra.mxu0 %v654
    %1370 = vmatprep.subr.mxu0 0.0
    %1371 = vmatpush1.msra.mxu0 %v655
    %1372 = vmatprep.subr.mxu0 0.0
    %1373 = vmatpush1.msra.mxu0 %v656
    %1374 = vmatprep.subr.mxu0 0.0
    %1375 = vmatpush1.msra.mxu0 %v657
    %1376 = vmatprep.subr.mxu0 0.0
    %1377 = vmatpush1.msra.mxu0 %v658
    %1378 = vmatprep.subr.mxu0 0.0
    %1379 = vmatpush1.msra.mxu0 %v659
    %1380 = vmatprep.subr.mxu0 0.0
    %1381 = vmatpush1.msra.mxu0 %v660
    %1382 = vmatprep.subr.mxu0 0.0
    %1383 = vmatpush1.msra.mxu0 %v661
    %1384 = vmatprep.subr.mxu0 0.0
    %1385 = vmatpush1.msra.mxu0 %v662
    %1386 = vmatprep.subr.mxu0 0.0
    %1387 = vmatpush1.msra.mxu0 %v663
    %1388 = vmatprep.subr.mxu0 0.0
    %1389 = vmatpush1.msra.mxu0 %v664
    %1390 = vmatprep.subr.mxu0 0.0
    %1391 = vmatpush1.msra.mxu0 %v665
    %1392 = vmatprep.subr.mxu0 0.0
    %1393 = vmatpush1.msra.mxu0 %v666
    %1394 = vmatprep.subr.mxu0 0.0
    %1395 = vmatpush1.msra.mxu0 %v667
    %1396 = vmatprep.mubr.f32.mxu0 %v1236
    %1397 = vmatmul.mubr.f32.gmra.mrb[0].mxu0 %v1234
    %v1398 = vpop.f32.mrb[0].mxu0
    %v1399 = vadd.f32 %v1329, %v1398
    %v1400 = vpop.f32.mrb[0].mxu0
    %1401 = vdwg.mxu0
    %1402 = vmatprep.subr.mxu0 0.0
    %1403 = vmatpush1.msra.mxu0 %v842
    %1404 = vmatprep.subr.mxu0 0.0
    %1405 = vmatpush1.msra.mxu0 %v843
    %1406 = vmatprep.subr.mxu0 0.0
    %1407 = vmatpush1.msra.mxu0 %v844
    %1408 = vmatprep.subr.mxu0 0.0
    %1409 = vmatpush1.msra.mxu0 %v845
    %1410 = vmatprep.subr.mxu0 0.0
    %1411 = vmatpush1.msra.mxu0 %v846
    %1412 = vmatprep.subr.mxu0 0.0
    %1413 = vmatpush1.msra.mxu0 %v847
    %1414 = vmatprep.subr.mxu0 0.0
    %1415 = vmatpush1.msra.mxu0 %v848
    %1416 = vmatprep.subr.mxu0 0.0
    %1417 = vmatpush1.msra.mxu0 %v849
    %1418 = vmatprep.subr.mxu0 0.0
    %1419 = vmatpush1.msra.mxu0 %v850
    %1420 = vmatprep.subr.mxu0 0.0
    %1421 = vmatpush1.msra.mxu0 %v851
    %1422 = vmatprep.subr.mxu0 0.0
    %1423 = vmatpush1.msra.mxu0 %v852
    %1424 = vmatprep.subr.mxu0 0.0
    %1425 = vmatpush1.msra.mxu0 %v853
    %1426 = vmatprep.subr.mxu0 0.0
    %1427 = vmatpush1.msra.mxu0 %v854
    %1428 = vmatprep.subr.mxu0 0.0
    %1429 = vmatpush1.msra.mxu0 %v855
    %1430 = vmatprep.subr.mxu0 0.0
    %1431 = vmatpush1.msra.mxu0 %v856
    %1432 = vmatprep.subr.mxu0 0.0
    %1433 = vmatpush1.msra.mxu0 %v857
    %1434 = vmatprep.subr.mxu0 0.0
    %1435 = vmatpush1.msra.mxu0 %v858
    %1436 = vmatprep.subr.mxu0 0.0
    %1437 = vmatpush1.msra.mxu0 %v859
    %1438 = vmatprep.subr.mxu0 0.0
    %1439 = vmatpush1.msra.mxu0 %v860
    %1440 = vmatprep.subr.mxu0 0.0
    %1441 = vmatpush1.msra.mxu0 %v861
    %1442 = vmatprep.subr.mxu0 0.0
    %1443 = vmatpush1.msra.mxu0 %v862
    %1444 = vmatprep.subr.mxu0 0.0
    %1445 = vmatpush1.msra.mxu0 %v863
    %1446 = vmatprep.subr.mxu0 0.0
    %1447 = vmatpush1.msra.mxu0 %v864
    %1448 = vmatprep.subr.mxu0 0.0
    %1449 = vmatpush1.msra.mxu0 %v865
    %1450 = vmatprep.subr.mxu0 0.0
    %1451 = vmatpush1.msra.mxu0 %v866
    %1452 = vmatprep.subr.mxu0 0.0
    %1453 = vmatpush1.msra.mxu0 %v867
    %1454 = vmatprep.subr.mxu0 0.0
    %1455 = vmatpush1.msra.mxu0 %v868
    %1456 = vmatprep.subr.mxu0 0.0
    %1457 = vmatpush1.msra.mxu0 %v869
    %1458 = vmatprep.subr.mxu0 0.0
    %1459 = vmatpush1.msra.mxu0 %v870
    %1460 = vmatprep.subr.mxu0 0.0
    %1461 = vmatpush1.msra.mxu0 %v871
    %1462 = vmatprep.subr.mxu0 0.0
    %1463 = vmatpush1.msra.mxu0 %v872
    %1464 = vmatprep.subr.mxu0 0.0
    %1465 = vmatpush1.msra.mxu0 %v873
    %1466 = vmatprep.mubr.f32.mxu0 %v1248
    %1467 = vmatmul.mubr.f32.gmra.mrb[0].mxu0 %v1246
    %v1468 = vpop.f32.mrb[0].mxu0
    %v1469 = vadd.f32 0.0, %v1468
    %v1470 = vpop.f32.mrb[0].mxu0
    %1471 = vdwg.mxu0
    %v1472 = vadd.f32 %v1399, %v1469
    %1473 = vmatprep.subr.mxu0 0.0
    %1474 = vmatpush1.msra.mxu0 %v946
    %1475 = vmatprep.subr.mxu0 0.0
    %1476 = vmatpush1.msra.mxu0 %v947
    %1477 = vmatprep.subr.mxu0 0.0
    %1478 = vmatpush1.msra.mxu0 %v948
    %1479 = vmatprep.subr.mxu0 0.0
    %1480 = vmatpush1.msra.mxu0 %v949
    %1481 = vmatprep.subr.mxu0 0.0
    %1482 = vmatpush1.msra.mxu0 %v950
    %1483 = vmatprep.subr.mxu0 0.0
    %1484 = vmatpush1.msra.mxu0 %v951
    %1485 = vmatprep.subr.mxu0 0.0
    %1486 = vmatpush1.msra.mxu0 %v952
    %1487 = vmatprep.subr.mxu0 0.0
    %1488 = vmatpush1.msra.mxu0 %v953
    %1489 = vmatprep.subr.mxu0 0.0
    %1490 = vmatpush1.msra.mxu0 %v954
    %1491 = vmatprep.subr.mxu0 0.0
    %1492 = vmatpush1.msra.mxu0 %v955
    %1493 = vmatprep.subr.mxu0 0.0
    %1494 = vmatpush1.msra.mxu0 %v956
    %1495 = vmatprep.subr.mxu0 0.0
    %1496 = vmatpush1.msra.mxu0 %v957
    %1497 = vmatprep.subr.mxu0 0.0
    %1498 = vmatpush1.msra.mxu0 %v958
    %1499 = vmatprep.subr.mxu0 0.0
    %1500 = vmatpush1.msra.mxu0 %v959
    %1501 = vmatprep.subr.mxu0 0.0
    %1502 = vmatpush1.msra.mxu0 %v960
    %1503 = vmatprep.subr.mxu0 0.0
    %1504 = vmatpush1.msra.mxu0 %v961
    %1505 = vmatprep.subr.mxu0 0.0
    %1506 = vmatpush1.msra.mxu0 %v962
    %1507 = vmatprep.subr.mxu0 0.0
    %1508 = vmatpush1.msra.mxu0 %v963
    %1509 = vmatprep.subr.mxu0 0.0
    %1510 = vmatpush1.msra.mxu0 %v964
    %1511 = vmatprep.subr.mxu0 0.0
    %1512 = vmatpush1.msra.mxu0 %v965
    %1513 = vmatprep.subr.mxu0 0.0
    %1514 = vmatpush1.msra.mxu0 %v966
    %1515 = vmatprep.subr.mxu0 0.0
    %1516 = vmatpush1.msra.mxu0 %v967
    %1517 = vmatprep.subr.mxu0 0.0
    %1518 = vmatpush1.msra.mxu0 %v968
    %1519 = vmatprep.subr.mxu0 0.0
    %1520 = vmatpush1.msra.mxu0 %v969
    %1521 = vmatprep.subr.mxu0 0.0
    %1522 = vmatpush1.msra.mxu0 %v970
    %1523 = vmatprep.subr.mxu0 0.0
    %1524 = vmatpush1.msra.mxu0 %v971
    %1525 = vmatprep.subr.mxu0 0.0
    %1526 = vmatpush1.msra.mxu0 %v972
    %1527 = vmatprep.subr.mxu0 0.0
    %1528 = vmatpush1.msra.mxu0 %v973
    %1529 = vmatprep.subr.mxu0 0.0
    %1530 = vmatpush1.msra.mxu0 %v974
    %1531 = vmatprep.subr.mxu0 0.0
    %1532 = vmatpush1.msra.mxu0 %v975
    %1533 = vmatprep.subr.mxu0 0.0
    %1534 = vmatpush1.msra.mxu0 %v976
    %1535 = vmatprep.subr.mxu0 0.0
    %1536 = vmatpush1.msra.mxu0 %v977
    %1537 = vmatprep.mubr.f32.mxu0 %v1254
    %1538 = vmatmul.mubr.f32.gmra.mrb[0].mxu0 %v1252
    %v1539 = vpop.f32.mrb[0].mxu0
    %v1540 = vadd.f32 0.0, %v1539
    %v1541 = vpop.f32.mrb[0].mxu0
    %1542 = vdwg.mxu0
    %v1543 = vadd.f32 %v1472, %v1540
    %1544 = vmatprep.subr.mxu0 0.0
    %1545 = vmatpush1.msra.mxu0 %v1050
    %1546 = vmatprep.subr.mxu0 0.0
    %1547 = vmatpush1.msra.mxu0 %v1051
    %1548 = vmatprep.subr.mxu0 0.0
    %1549 = vmatpush1.msra.mxu0 %v1052
    %1550 = vmatprep.subr.mxu0 0.0
    %1551 = vmatpush1.msra.mxu0 %v1053
    %1552 = vmatprep.subr.mxu0 0.0
    %1553 = vmatpush1.msra.mxu0 %v1054
    %1554 = vmatprep.subr.mxu0 0.0
    %1555 = vmatpush1.msra.mxu0 %v1055
    %1556 = vmatprep.subr.mxu0 0.0
    %1557 = vmatpush1.msra.mxu0 %v1056
    %1558 = vmatprep.subr.mxu0 0.0
    %1559 = vmatpush1.msra.mxu0 %v1057
    %1560 = vmatprep.subr.mxu0 0.0
    %1561 = vmatpush1.msra.mxu0 %v1058
    %1562 = vmatprep.subr.mxu0 0.0
    %1563 = vmatpush1.msra.mxu0 %v1059
    %1564 = vmatprep.subr.mxu0 0.0
    %1565 = vmatpush1.msra.mxu0 %v1060
    %1566 = vmatprep.subr.mxu0 0.0
    %1567 = vmatpush1.msra.mxu0 %v1061
    %1568 = vmatprep.subr.mxu0 0.0
    %1569 = vmatpush1.msra.mxu0 %v1062
    %1570 = vmatprep.subr.mxu0 0.0
    %1571 = vmatpush1.msra.mxu0 %v1063
    %1572 = vmatprep.subr.mxu0 0.0
    %1573 = vmatpush1.msra.mxu0 %v1064
    %1574 = vmatprep.subr.mxu0 0.0
    %1575 = vmatpush1.msra.mxu0 %v1065
    %1576 = vmatprep.subr.mxu0 0.0
    %1577 = vmatpush1.msra.mxu0 %v1066
    %1578 = vmatprep.subr.mxu0 0.0
    %1579 = vmatpush1.msra.mxu0 %v1067
    %1580 = vmatprep.subr.mxu0 0.0
    %1581 = vmatpush1.msra.mxu0 %v1068
    %1582 = vmatprep.subr.mxu0 0.0
    %1583 = vmatpush1.msra.mxu0 %v1069
    %1584 = vmatprep.subr.mxu0 0.0
    %1585 = vmatpush1.msra.mxu0 %v1070
    %1586 = vmatprep.subr.mxu0 0.0
    %1587 = vmatpush1.msra.mxu0 %v1071
    %1588 = vmatprep.subr.mxu0 0.0
    %1589 = vmatpush1.msra.mxu0 %v1072
    %1590 = vmatprep.subr.mxu0 0.0
    %1591 = vmatpush1.msra.mxu0 %v1073
    %1592 = vmatprep.subr.mxu0 0.0
    %1593 = vmatpush1.msra.mxu0 %v1074
    %1594 = vmatprep.subr.mxu0 0.0
    %1595 = vmatpush1.msra.mxu0 %v1075
    %1596 = vmatprep.subr.mxu0 0.0
    %1597 = vmatpush1.msra.mxu0 %v1076
    %1598 = vmatprep.subr.mxu0 0.0
    %1599 = vmatpush1.msra.mxu0 %v1077
    %1600 = vmatprep.subr.mxu0 0.0
    %1601 = vmatpush1.msra.mxu0 %v1078
    %1602 = vmatprep.subr.mxu0 0.0
    %1603 = vmatpush1.msra.mxu0 %v1079
    %1604 = vmatprep.subr.mxu0 0.0
    %1605 = vmatpush1.msra.mxu0 %v1080
    %1606 = vmatprep.subr.mxu0 0.0
    %1607 = vmatpush1.msra.mxu0 %v1081
    %1608 = vmatprep.mubr.f32.mxu0 %v1260
    %1609 = vmatmul.mubr.f32.gmra.mrb[0].mxu0 %v1258
    %v1610 = vpop.f32.mrb[0].mxu0
    %v1611 = vadd.f32 0.0, %v1610
    %v1612 = vpop.f32.mrb[0].mxu0
    %1613 = vdwg.mxu0
    %v1614 = vadd.f32 %v1543, %v1611
    %v1615 = vadd.f32 %v1614, %v45
    %v1616 = vmax.f32 %v1615, 0.0
    %v1617 = vrot.slane %v1616, 1
    %v1618 = vmax.f32 %v1616, %v1617
    %1619 = vrot.lane.b32.xlu0 %v1618, 127
    %v1620 = vpop.permute.xlu0 %1619
    %v1621 = vmax.f32 %v1618, %v1620
    %v1623 = vrot.slane %v1621, 2
    %v1624 = vrot.slane %v1621, 4
    %v1625 = vrot.slane %v1621, 6
    %v1626 = vrot.slane %v1621, 7
    %v1627 = vrot.slane %v1623, 7
    %v1628 = vrot.slane %v1624, 7
    %v1629 = vrot.slane %v1625, 7
    %vm1634 = vcmask 1040384
    %v1635 = vsel %vm1634, %v1159, %v1626
    %v1636 = vsel %vm1634, %v1161, %v1627
    %v1637 = vsel %vm1634, %v1163, %v1628
    %v1638 = vsel %vm1634, %v1165, %v1629
    %v1639 = vld [vmem:[#allocation2] sm:$0xff]
    %v1640 = vld [vmem:[#allocation2 + $0x8] sm:$0xff]
    %v1641 = vld [vmem:[#allocation2 + $0x10] sm:$0xff]
    %v1642 = vld [vmem:[#allocation2 + $0x18] sm:$0xff]
    %v1643 = vld [vmem:[#allocation2 + $0x20] sm:$0xff]
    %v1644 = vld [vmem:[#allocation2 + $0x28] sm:$0xff]
    %v1645 = vld [vmem:[#allocation2 + $0x30] sm:$0xff]
    %v1646 = vld [vmem:[#allocation2 + $0x38] sm:$0xff]
    %v1647 = vld [vmem:[#allocation2 + $0x40] sm:$0xff]
    %v1648 = vld [vmem:[#allocation2 + $0x48] sm:$0xff]
    %v1649 = vld [vmem:[#allocation2 + $0x50] sm:$0xff]
    %v1650 = vld [vmem:[#allocation2 + $0x58] sm:$0xff]
    %v1651 = vld [vmem:[#allocation2 + $0x60] sm:$0xff]
    %v1652 = vld [vmem:[#allocation2 + $0x68] sm:$0xff]
    %v1653 = vld [vmem:[#allocation2 + $0x70] sm:$0xff]
    %v1654 = vld [vmem:[#allocation2 + $0x78] sm:$0xff]
    %v1655 = vld [vmem:[#allocation2 + $0x80] sm:$0xff]
    %v1656 = vld [vmem:[#allocation2 + $0x88] sm:$0xff]
    %v1657 = vld [vmem:[#allocation2 + $0x90] sm:$0xff]
    %v1658 = vld [vmem:[#allocation2 + $0x98] sm:$0xff]
    %v1659 = vld [vmem:[#allocation2 + $0xa0] sm:$0xff]
    %v1660 = vld [vmem:[#allocation2 + $0xa8] sm:$0xff]
    %v1661 = vld [vmem:[#allocation2 + $0xb0] sm:$0xff]
    %v1662 = vld [vmem:[#allocation2 + $0xb8] sm:$0xff]
    %v1663 = vld [vmem:[#allocation2 + $0xc0] sm:$0xff]
    %v1664 = vld [vmem:[#allocation2 + $0xc8] sm:$0xff]
    %v1665 = vld [vmem:[#allocation2 + $0xd0] sm:$0xff]
    %v1666 = vld [vmem:[#allocation2 + $0xd8] sm:$0xff]
    %v1667 = vld [vmem:[#allocation2 + $0xe0] sm:$0xff]
    %v1668 = vld [vmem:[#allocation2 + $0xe8] sm:$0xff]
    %v1669 = vld [vmem:[#allocation2 + $0xf0] sm:$0xff]
    %v1670 = vld [vmem:[#allocation2 + $0xf8] sm:$0xff]
    %v1671 = vld [vmem:[#allocation2 + $0x100] sm:$0xff]
    %v1672 = vld [vmem:[#allocation2 + $0x108] sm:$0xff]
    %v1673 = vld [vmem:[#allocation2 + $0x110] sm:$0xff]
    %v1674 = vld [vmem:[#allocation2 + $0x118] sm:$0xff]
    %v1675 = vld [vmem:[#allocation2 + $0x120] sm:$0xff]
    %v1676 = vld [vmem:[#allocation2 + $0x128] sm:$0xff]
    %v1677 = vld [vmem:[#allocation2 + $0x130] sm:$0xff]
    %v1678 = vld [vmem:[#allocation2 + $0x138] sm:$0xff]
    %v1679 = vld [vmem:[#allocation2 + $0x140] sm:$0xff]
    %v1680 = vld [vmem:[#allocation2 + $0x148] sm:$0xff]
    %v1681 = vld [vmem:[#allocation2 + $0x150] sm:$0xff]
    %v1682 = vld [vmem:[#allocation2 + $0x158] sm:$0xff]
    %v1683 = vld [vmem:[#allocation2 + $0x160] sm:$0xff]
    %v1684 = vld [vmem:[#allocation2 + $0x168] sm:$0xff]
    %v1685 = vld [vmem:[#allocation2 + $0x170] sm:$0xff]
    %v1686 = vld [vmem:[#allocation2 + $0x178] sm:$0xff]
    %v1687 = vld [vmem:[#allocation2 + $0x180] sm:$0xff]
    %v1688 = vld [vmem:[#allocation2 + $0x188] sm:$0xff]
    %v1689 = vld [vmem:[#allocation2 + $0x190] sm:$0xff]
    %v1690 = vld [vmem:[#allocation2 + $0x198] sm:$0xff]
    %v1691 = vld [vmem:[#allocation2 + $0x1a0] sm:$0xff]
    %v1692 = vld [vmem:[#allocation2 + $0x1a8] sm:$0xff]
    %v1693 = vld [vmem:[#allocation2 + $0x1b0] sm:$0xff]
    %v1694 = vld [vmem:[#allocation2 + $0x1b8] sm:$0xff]
    %v1695 = vld [vmem:[#allocation2 + $0x1c0] sm:$0xff]
    %v1696 = vld [vmem:[#allocation2 + $0x1c8] sm:$0xff]
    %v1697 = vld [vmem:[#allocation2 + $0x1d0] sm:$0xff]
    %v1698 = vld [vmem:[#allocation2 + $0x1d8] sm:$0xff]
    %v1699 = vld [vmem:[#allocation2 + $0x1e0] sm:$0xff]
    %v1700 = vld [vmem:[#allocation2 + $0x1e8] sm:$0xff]
    %v1701 = vld [vmem:[#allocation2 + $0x1f0] sm:$0xff]
    %v1702 = vld [vmem:[#allocation2 + $0x1f8] sm:$0xff]
    %1703 = vmatprep.subr.mxu0 0.0
    %1704 = vmatpush1.msra.mxu0 %v1639
    %1705 = vmatprep.subr.mxu0 0.0
    %1706 = vmatpush1.msra.mxu0 %v1640
    %1707 = vmatprep.subr.mxu0 0.0
    %1708 = vmatpush1.msra.mxu0 %v1641
    %1709 = vmatprep.subr.mxu0 0.0
    %1710 = vmatpush1.msra.mxu0 %v1642
    %1711 = vmatprep.subr.mxu0 0.0
    %1712 = vmatpush1.msra.mxu0 %v1643
    %1713 = vmatprep.subr.mxu0 0.0
    %1714 = vmatpush1.msra.mxu0 %v1644
    %1715 = vmatprep.subr.mxu0 0.0
    %1716 = vmatpush1.msra.mxu0 %v1645
    %1717 = vmatprep.subr.mxu0 0.0
    %1718 = vmatpush1.msra.mxu0 %v1646
    %1719 = vmatprep.subr.mxu0 0.0
    %1720 = vmatpush1.msra.mxu0 %v1647
    %1721 = vmatprep.subr.mxu0 0.0
    %1722 = vmatpush1.msra.mxu0 %v1648
    %1723 = vmatprep.subr.mxu0 0.0
    %1724 = vmatpush1.msra.mxu0 %v1649
    %1725 = vmatprep.subr.mxu0 0.0
    %1726 = vmatpush1.msra.mxu0 %v1650
    %1727 = vmatprep.subr.mxu0 0.0
    %1728 = vmatpush1.msra.mxu0 %v1651
    %1729 = vmatprep.subr.mxu0 0.0
    %1730 = vmatpush1.msra.mxu0 %v1652
    %1731 = vmatprep.subr.mxu0 0.0
    %1732 = vmatpush1.msra.mxu0 %v1653
    %1733 = vmatprep.subr.mxu0 0.0
    %1734 = vmatpush1.msra.mxu0 %v1654
    %1735 = vmatprep.subr.mxu0 0.0
    %1736 = vmatpush1.msra.mxu0 %v1655
    %1737 = vmatprep.subr.mxu0 0.0
    %1738 = vmatpush1.msra.mxu0 %v1656
    %1739 = vmatprep.subr.mxu0 0.0
    %1740 = vmatpush1.msra.mxu0 %v1657
    %1741 = vmatprep.subr.mxu0 0.0
    %1742 = vmatpush1.msra.mxu0 %v1658
    %1743 = vmatprep.subr.mxu0 0.0
    %1744 = vmatpush1.msra.mxu0 %v1659
    %1745 = vmatprep.subr.mxu0 0.0
    %1746 = vmatpush1.msra.mxu0 %v1660
    %1747 = vmatprep.subr.mxu0 0.0
    %1748 = vmatpush1.msra.mxu0 %v1661
    %1749 = vmatprep.subr.mxu0 0.0
    %1750 = vmatpush1.msra.mxu0 %v1662
    %1751 = vmatprep.subr.mxu0 0.0
    %1752 = vmatpush1.msra.mxu0 %v1663
    %1753 = vmatprep.subr.mxu0 0.0
    %1754 = vmatpush1.msra.mxu0 %v1664
    %1755 = vmatprep.subr.mxu0 0.0
    %1756 = vmatpush1.msra.mxu0 %v1665
    %1757 = vmatprep.subr.mxu0 0.0
    %1758 = vmatpush1.msra.mxu0 %v1666
    %1759 = vmatprep.subr.mxu0 0.0
    %1760 = vmatpush1.msra.mxu0 %v1667
    %1761 = vmatprep.subr.mxu0 0.0
    %1762 = vmatpush1.msra.mxu0 %v1668
    %1763 = vmatprep.subr.mxu0 0.0
    %1764 = vmatpush1.msra.mxu0 %v1669
    %1765 = vmatprep.subr.mxu0 0.0
    %1766 = vmatpush1.msra.mxu0 %v1670
    %1767 = vmatprep.mubr.f32.mxu0 %v1636
    %1768 = vmatmul.mubr.f32.gmra.mrb[0].mxu0 %v1635
    %v1769 = vpop.f32.mrb[0].mxu0
    %v1770 = vadd.f32 %v46, %v1769
    %v1771 = vpop.f32.mrb[0].mxu0
    %1772 = vdwg.mxu0
    %1773 = vmatprep.subr.mxu0 0.0
    %1774 = vmatpush1.msra.mxu0 %v1671
    %1775 = vmatprep.subr.mxu0 0.0
    %1776 = vmatpush1.msra.mxu0 %v1672
    %1777 = vmatprep.subr.mxu0 0.0
    %1778 = vmatpush1.msra.mxu0 %v1673
    %1779 = vmatprep.subr.mxu0 0.0
    %1780 = vmatpush1.msra.mxu0 %v1674
    %1781 = vmatprep.subr.mxu0 0.0
    %1782 = vmatpush1.msra.mxu0 %v1675
    %1783 = vmatprep.subr.mxu0 0.0
    %1784 = vmatpush1.msra.mxu0 %v1676
    %1785 = vmatprep.subr.mxu0 0.0
    %1786 = vmatpush1.msra.mxu0 %v1677
    %1787 = vmatprep.subr.mxu0 0.0
    %1788 = vmatpush1.msra.mxu0 %v1678
    %1789 = vmatprep.subr.mxu0 0.0
    %1790 = vmatpush1.msra.mxu0 %v1679
    %1791 = vmatprep.subr.mxu0 0.0
    %1792 = vmatpush1.msra.mxu0 %v1680
    %1793 = vmatprep.subr.mxu0 0.0
    %1794 = vmatpush1.msra.mxu0 %v1681
    %1795 = vmatprep.subr.mxu0 0.0
    %1796 = vmatpush1.msra.mxu0 %v1682
    %1797 = vmatprep.subr.mxu0 0.0
    %1798 = vmatpush1.msra.mxu0 %v1683
    %1799 = vmatprep.subr.mxu0 0.0
    %1800 = vmatpush1.msra.mxu0 %v1684
    %1801 = vmatprep.subr.mxu0 0.0
    %1802 = vmatpush1.msra.mxu0 %v1685
    %1803 = vmatprep.subr.mxu0 0.0
    %1804 = vmatpush1.msra.mxu0 %v1686
    %1805 = vmatprep.subr.mxu0 0.0
    %1806 = vmatpush1.msra.mxu0 %v1687
    %1807 = vmatprep.subr.mxu0 0.0
    %1808 = vmatpush1.msra.mxu0 %v1688
    %1809 = vmatprep.subr.mxu0 0.0
    %1810 = vmatpush1.msra.mxu0 %v1689
    %1811 = vmatprep.subr.mxu0 0.0
    %1812 = vmatpush1.msra.mxu0 %v1690
    %1813 = vmatprep.subr.mxu0 0.0
    %1814 = vmatpush1.msra.mxu0 %v1691
    %1815 = vmatprep.subr.mxu0 0.0
    %1816 = vmatpush1.msra.mxu0 %v1692
    %1817 = vmatprep.subr.mxu0 0.0
    %1818 = vmatpush1.msra.mxu0 %v1693
    %1819 = vmatprep.subr.mxu0 0.0
    %1820 = vmatpush1.msra.mxu0 %v1694
    %1821 = vmatprep.subr.mxu0 0.0
    %1822 = vmatpush1.msra.mxu0 %v1695
    %1823 = vmatprep.subr.mxu0 0.0
    %1824 = vmatpush1.msra.mxu0 %v1696
    %1825 = vmatprep.subr.mxu0 0.0
    %1826 = vmatpush1.msra.mxu0 %v1697
    %1827 = vmatprep.subr.mxu0 0.0
    %1828 = vmatpush1.msra.mxu0 %v1698
    %1829 = vmatprep.subr.mxu0 0.0
    %1830 = vmatpush1.msra.mxu0 %v1699
    %1831 = vmatprep.subr.mxu0 0.0
    %1832 = vmatpush1.msra.mxu0 %v1700
    %1833 = vmatprep.subr.mxu0 0.0
    %1834 = vmatpush1.msra.mxu0 %v1701
    %1835 = vmatprep.subr.mxu0 0.0
    %1836 = vmatpush1.msra.mxu0 %v1702
    %1837 = vmatprep.mubr.f32.mxu0 %v1638
    %1838 = vmatmul.mubr.f32.gmra.mrb[0].mxu0 %v1637
    %v1839 = vpop.f32.mrb[0].mxu0
    %v1840 = vadd.f32 %v1770, %v1839
    %v1841 = vpop.f32.mrb[0].mxu0
    %1842 = vdwg.mxu0
    %v1843 = vmax.f32 %v1840, 0.0
    %v1844 = vld [vmem:[%s4] sm:$0xff]
    %v1845 = vld [vmem:[%s4 + $0x8] sm:$0xff]
    %v1846 = vld [vmem:[%s4 + $0x10] sm:$0xff]
    %v1847 = vld [vmem:[%s4 + $0x18] sm:$0xff]
    %v1848 = vld [vmem:[%s4 + $0x20] sm:$0xff]
    %v1849 = vld [vmem:[%s4 + $0x28] sm:$0xff]
    %v1850 = vld [vmem:[%s4 + $0x30] sm:$0xff]
    %v1851 = vld [vmem:[%s4 + $0x38] sm:$0xff]
    %v1852 = vld [vmem:[%s4 + $0x40] sm:$0xff]
    %v1853 = vld [vmem:[%s4 + $0x48] sm:$0xff]
    %v1854 = vld [vmem:[%s4 + $0x50] sm:$0xff]
    %v1855 = vld [vmem:[%s4 + $0x58] sm:$0xff]
    %v1856 = vld [vmem:[%s4 + $0x60] sm:$0xff]
    %v1857 = vld [vmem:[%s4 + $0x68] sm:$0xff]
    %v1858 = vld [vmem:[%s4 + $0x70] sm:$0xff]
    %v1859 = vld [vmem:[%s4 + $0x78] sm:$0xff]
    %1860 = vmatprep.subr.mxu0 0.0
    %1861 = vmatpush1.msra.mxu0 %v1844
    %1862 = vmatprep.subr.mxu0 0.0
    %1863 = vmatpush1.msra.mxu0 %v1845
    %1864 = vmatprep.subr.mxu0 0.0
    %1865 = vmatpush1.msra.mxu0 %v1846
    %1866 = vmatprep.subr.mxu0 0.0
    %1867 = vmatpush1.msra.mxu0 %v1847
    %1868 = vmatprep.subr.mxu0 0.0
    %1869 = vmatpush1.msra.mxu0 %v1848
    %1870 = vmatprep.subr.mxu0 0.0
    %1871 = vmatpush1.msra.mxu0 %v1849
    %1872 = vmatprep.subr.mxu0 0.0
    %1873 = vmatpush1.msra.mxu0 %v1850
    %1874 = vmatprep.subr.mxu0 0.0
    %1875 = vmatpush1.msra.mxu0 %v1851
    %1876 = vmatprep.subr.mxu0 0.0
    %1877 = vmatpush1.msra.mxu0 %v1852
    %1878 = vmatprep.subr.mxu0 0.0
    %1879 = vmatpush1.msra.mxu0 %v1853
    %1880 = vmatprep.subr.mxu0 0.0
    %1881 = vmatpush1.msra.mxu0 %v1854
    %1882 = vmatprep.subr.mxu0 0.0
    %1883 = vmatpush1.msra.mxu0 %v1855
    %1884 = vmatprep.subr.mxu0 0.0
    %1885 = vmatpush1.msra.mxu0 %v1856
    %1886 = vmatprep.subr.mxu0 0.0
    %1887 = vmatpush1.msra.mxu0 %v1857
    %1888 = vmatprep.subr.mxu0 0.0
    %1889 = vmatpush1.msra.mxu0 %v1858
    %1890 = vmatprep.subr.mxu0 0.0
    %1891 = vmatpush1.msra.mxu0 %v1859
    %1892 = vmatprep.subr.mxu0 0.0
    %1893 = vmatpush1.msra.mxu0 0.0
    %1894 = vmatprep.subr.mxu0 0.0
    %1895 = vmatpush1.msra.mxu0 0.0
    %1896 = vmatprep.subr.mxu0 0.0
    %1897 = vmatpush1.msra.mxu0 0.0
    %1898 = vmatprep.subr.mxu0 0.0
    %1899 = vmatpush1.msra.mxu0 0.0
    %1900 = vmatprep.subr.mxu0 0.0
    %1901 = vmatpush1.msra.mxu0 0.0
    %1902 = vmatprep.subr.mxu0 0.0
    %1903 = vmatpush1.msra.mxu0 0.0
    %1904 = vmatprep.subr.mxu0 0.0
    %1905 = vmatpush1.msra.mxu0 0.0
    %1906 = vmatprep.subr.mxu0 0.0
    %1907 = vmatpush1.msra.mxu0 0.0
    %1908 = vmatprep.subr.mxu0 0.0
    %1909 = vmatpush1.msra.mxu0 0.0
    %1910 = vmatprep.subr.mxu0 0.0
    %1911 = vmatpush1.msra.mxu0 0.0
    %1912 = vmatprep.subr.mxu0 0.0
    %1913 = vmatpush1.msra.mxu0 0.0
    %1914 = vmatprep.subr.mxu0 0.0
    %1915 = vmatpush1.msra.mxu0 0.0
    %1916 = vmatprep.subr.mxu0 0.0
    %1917 = vmatpush1.msra.mxu0 0.0
    %1918 = vmatprep.subr.mxu0 0.0
    %1919 = vmatpush1.msra.mxu0 0.0
    %1920 = vmatprep.subr.mxu0 0.0
    %1921 = vmatpush1.msra.mxu0 0.0
    %1922 = vmatprep.subr.mxu0 0.0
    %1923 = vmatpush1.msra.mxu0 0.0
    %1924 = vmatprep.mubr.f32.mxu0 0.0
    %1925 = vmatmul.mubr.f32.gmra.mrb[0].mxu0 %v1843
    %v1926 = vpop.f32.mrb[0].mxu0
    %v1927 = vadd.f32 %v47, %v1926
    %v1928 = vpop.f32.mrb[0].mxu0
    %1929 = vdwg.mxu0
    %v1930 = vmax.f32 %v1927, 0.0
    %v1931 = vld [vmem:[%s5] sm:$0xff]
    %v1932 = vld [vmem:[%s5 + $0x8] sm:$0xff]
    %v1933 = vld [vmem:[%s5 + $0x10] sm:$0xff]
    %v1934 = vld [vmem:[%s5 + $0x18] sm:$0xff]
    %v1935 = vld [vmem:[%s5 + $0x20] sm:$0xff]
    %v1936 = vld [vmem:[%s5 + $0x28] sm:$0xff]
    %v1937 = vld [vmem:[%s5 + $0x30] sm:$0xff]
    %v1938 = vld [vmem:[%s5 + $0x38] sm:$0xff]
    %vm1939 = vcmask 523264
    %v1941 = vsel %vm1939, %v1930, 0
    %1943 = vmatprep.subr.mxu0 0.0
    %1944 = vmatpush1.msra.mxu0 %v1931
    %1945 = vmatprep.subr.mxu0 0.0
    %1946 = vmatpush1.msra.mxu0 %v1932
    %1947 = vmatprep.subr.mxu0 0.0
    %1948 = vmatpush1.msra.mxu0 %v1933
    %1949 = vmatprep.subr.mxu0 0.0
    %1950 = vmatpush1.msra.mxu0 %v1934
    %1951 = vmatprep.subr.mxu0 0.0
    %1952 = vmatpush1.msra.mxu0 %v1935
    %1953 = vmatprep.subr.mxu0 0.0
    %1954 = vmatpush1.msra.mxu0 %v1936
    %1955 = vmatprep.subr.mxu0 0.0
    %1956 = vmatpush1.msra.mxu0 %v1937
    %1957 = vmatprep.subr.mxu0 0.0
    %1958 = vmatpush1.msra.mxu0 %v1938
    %1959 = vmatprep.subr.mxu0 0.0
    %1960 = vmatpush1.msra.mxu0 0.0
    %1961 = vmatprep.subr.mxu0 0.0
    %1962 = vmatpush1.msra.mxu0 0.0
    %1963 = vmatprep.subr.mxu0 0.0
    %1964 = vmatpush1.msra.mxu0 0.0
    %1965 = vmatprep.subr.mxu0 0.0
    %1966 = vmatpush1.msra.mxu0 0.0
    %1967 = vmatprep.subr.mxu0 0.0
    %1968 = vmatpush1.msra.mxu0 0.0
    %1969 = vmatprep.subr.mxu0 0.0
    %1970 = vmatpush1.msra.mxu0 0.0
    %1971 = vmatprep.subr.mxu0 0.0
    %1972 = vmatpush1.msra.mxu0 0.0
    %1973 = vmatprep.subr.mxu0 0.0
    %1974 = vmatpush1.msra.mxu0 0.0
    %1975 = vmatprep.subr.mxu0 0.0
    %1976 = vmatpush1.msra.mxu0 0.0
    %1977 = vmatprep.subr.mxu0 0.0
    %1978 = vmatpush1.msra.mxu0 0.0
    %1979 = vmatprep.subr.mxu0 0.0
    %1980 = vmatpush1.msra.mxu0 0.0
    %1981 = vmatprep.subr.mxu0 0.0
    %1982 = vmatpush1.msra.mxu0 0.0
    %1983 = vmatprep.subr.mxu0 0.0
    %1984 = vmatpush1.msra.mxu0 0.0
    %1985 = vmatprep.subr.mxu0 0.0
    %1986 = vmatpush1.msra.mxu0 0.0
    %1987 = vmatprep.subr.mxu0 0.0
    %1988 = vmatpush1.msra.mxu0 0.0
    %1989 = vmatprep.subr.mxu0 0.0
    %1990 = vmatpush1.msra.mxu0 0.0
    %1991 = vmatprep.subr.mxu0 0.0
    %1992 = vmatpush1.msra.mxu0 0.0
    %1993 = vmatprep.subr.mxu0 0.0
    %1994 = vmatpush1.msra.mxu0 0.0
    %1995 = vmatprep.subr.mxu0 0.0
    %1996 = vmatpush1.msra.mxu0 0.0
    %1997 = vmatprep.subr.mxu0 0.0
    %1998 = vmatpush1.msra.mxu0 0.0
    %1999 = vmatprep.subr.mxu0 0.0
    %2000 = vmatpush1.msra.mxu0 0.0
    %2001 = vmatprep.subr.mxu0 0.0
    %2002 = vmatpush1.msra.mxu0 0.0
    %2003 = vmatprep.subr.mxu0 0.0
    %2004 = vmatpush1.msra.mxu0 0.0
    %2005 = vmatprep.subr.mxu0 0.0
    %2006 = vmatpush1.msra.mxu0 0.0
    %2007 = vmatprep.mubr.f32.mxu0 0.0
    %2008 = vmatmul.mubr.f32.gmra.mrb[0].mxu0 %v1941
    %v2009 = vpop.f32.mrb[0].mxu0
    %v2010 = vadd.f32 %v48, %v2009
    %v2011 = vpop.f32.mrb[0].mxu0
    %2012 = vdwg.mxu0
    %vm2013 = vcmask 74752
    %2014 = vst.msk [vmem:[#allocation5] sm:$0x3] %vm2013, %v2010
    // Predicated region
    $region38: #{classifier_forward.1} parent=1 // pred_check
      _
    $region39: #{classifier_forward.1} parent=1 // pred_check_branch
      %2016 = sbr.rel (0) target = $region41
    $region40: #{classifier_forward.1} parent=1 // pred_region
      %s2018 = ssub.s32 32, 32
      %2019 = vsyncadd [#allocation4], %s2018
      %s2021 = sshll.u32 [#allocation5], 4
      %s2022 = int_to_ptr.vmem [resolvable:$true] %s2021
      %2024 = dma.vmem_to_hbm [thread:$0]  %s2022, 32, %s8, [#allocation4]
    $region41: #{classifier_forward.1} parent=1 // pred_fallthru
      _
    // Predicated region
    $region42: #{classifier_forward.1} parent=1 // pred_check
      _
    $region43: #{classifier_forward.1} parent=1 // pred_check_branch
      %2026 = sbr.rel (0) target = $region45
    $region44: #{classifier_forward.1} parent=1 // pred_region
      %2027 = dma.done [#allocation4], 32
    $region45: #{classifier_forward.1} parent=1 // pred_fallthru
      _
    %2028 = vsyncpa [#allocation3], 1
    %2029 = vsyncpa [#allocation4], 1

</llo_original>
